<compile_context>
chip_gen: v7x
topology: tpu7x:2x2x1
jax: 0.10.0
libtpu: 0.0.40
codegen_flags: <defaults>
</compile_context>

<pallas_src>
import functools

import jax
import jax.numpy as jnp
from jax.experimental import pallas as pl
from jax.experimental.pallas import tpu as pltpu


def _seq_tile(n, target):
    """Largest tile <= target that evenly divides n (multiple of 8), else n."""
    if n <= target:
        return n
    for t in range(min(target, n), 7, -1):
        if n % t == 0 and t % 8 == 0:
            return t
    return n  # fall back to un-tiled (full dim is always layout-legal)


def _mha_kernel(xq_ref, xkv_ref, wq_ref, wkv_ref, wo_ref, o_ref,
                q_sc, m_sc, l_sc, acc_sc, *, heads, head_dim):
    # xq_ref : (tq, D)    query-tile rows of x (batch dim squeezed)
    # xkv_ref: (tk, D)    kv-tile rows of x
    # wq_ref : (D, D)     pre-transposed Q projection, 1/sqrt(hd) pre-folded
    # wkv_ref: (D, 2D)    pre-transposed [K | V] projection (fused)
    # wo_ref : (D, D)     pre-transposed output projection
    # o_ref  : (tq, D)
    # q_sc   : (tq, D)          pre-scaled Q tile (persists across kv axis)
    # m_sc   : (H, tq, 1) f32   running row max per head
    # l_sc   : (H, tq, 1) f32   running softmax denominator per head
    # acc_sc : (H, tq, hd) f32  running softmax numerator (P @ V) per head
    j = pl.program_id(2)
    cdt = q_sc.dtype              # compute dtype fed to the MXU (= input dtype)
    d = wq_ref.shape[1]

    # ---- init on first KV tile: project Q once, reset online-softmax state ----
    @pl.when(j == 0)
    def _init():
        q = jnp.dot(xq_ref[...], wq_ref[...],
                    preferred_element_type=jnp.float32)
        q_sc[...] = q.astype(cdt)            # scale already folded into Wq
        m_sc[...] = jnp.full_like(m_sc, -jnp.inf)
        l_sc[...] = jnp.zeros_like(l_sc)
        acc_sc[...] = jnp.zeros_like(acc_sc)

    # ---- fused K|V projection for this KV tile (single MXU pass, f32 acc) ----
    kv = jnp.dot(xkv_ref[...], wkv_ref[...],
                 preferred_element_type=jnp.float32).astype(cdt)   # (tk, 2D)
    q = q_sc[...]

    # ---- per-head online softmax (heads = lane-column slices, no transposes) --
    for h in range(heads):
        lo, hi = h * head_dim, (h + 1) * head_dim
        qh = q[:, lo:hi]                              # (tq, hd)
        kh = kv[:, lo:hi]                             # (tk, hd)
        vh = kv[:, d + lo:d + hi]                     # (tk, hd)

        # scores: contract head_dim of q with head_dim of k -> (tq, tk)
        s = jax.lax.dot_general(qh, kh, (((1,), (1,)), ((), ())),
                                preferred_element_type=jnp.float32)

        m_prev = m_sc[h]                              # (tq, 1) f32
        m_new = jnp.maximum(m_prev, jnp.max(s, axis=-1, keepdims=True))
        alpha = jnp.exp(m_prev - m_new)               # rescale of old state
        p = jnp.exp(s - m_new)                        # (tq, tk) f32

        l_sc[h] = alpha * l_sc[h] + jnp.sum(p, axis=-1, keepdims=True)
        acc_sc[h] = alpha * acc_sc[h] + jnp.dot(p.astype(cdt), vh,
                                                preferred_element_type=jnp.float32)
        m_sc[h] = m_new

    # ---- finalize on last KV tile: normalize + fold head-merge into out-proj --
    @pl.when(j == pl.num_programs(2) - 1)
    def _finalize():
        tq = q_sc.shape[0]
        dim = wo_ref.shape[1]
        out = jnp.zeros((tq, dim), jnp.float32)
        for h in range(heads):
            lo, hi = h * head_dim, (h + 1) * head_dim
            ctx = acc_sc[h] * pl.reciprocal(l_sc[h], approx=True)   # (tq, hd)
            out = out + jnp.dot(ctx.astype(cdt), wo_ref[lo:hi, :],
                                preferred_element_type=jnp.float32)
        # dropout in to_out is identity at inference
        o_ref[...] = out.astype(o_ref.dtype)


def mha_pallas(x, w_qkv, w_out, heads, *, q_tile=256, kv_tile=256):
    """x: (B, N, D); w_qkv: (3D, D) torch-layout; w_out: (D, D) torch-layout.

    For production on v6e/v7x pass x (and weights) in bf16; the kernel feeds
    the MXU the native dtype and accumulates in f32.
    """
    b, n, d = x.shape
    assert d % heads == 0, "dim must be divisible by heads"
    head_dim = d // heads
    scale = float(head_dim) ** -0.5
    cdt = x.dtype

    # Split fused QKV weight into per-projection matrices, pre-transposed so
    # the kernel computes y = x @ W_t (PyTorch Linear computes x @ W.T).
    # The softmax scale is folded into Wq; K and V weights are concatenated so
    # the kernel does one (tk, D) @ (D, 2D) projection per kv tile.
    w_q = (jnp.transpose(w_qkv[0 * d:1 * d, :]) * scale).astype(cdt)   # (D, D)
    w_k = jnp.transpose(w_qkv[1 * d:2 * d, :]).astype(cdt)             # (D, D)
    w_v = jnp.transpose(w_qkv[2 * d:3 * d, :]).astype(cdt)             # (D, D)
    w_kv = jnp.concatenate([w_k, w_v], axis=1)                         # (D, 2D)
    w_o = jnp.transpose(w_out).astype(cdt)                             # (D, D)

    tq = _seq_tile(n, q_tile)
    tk = _seq_tile(n, kv_tile)
    nq, nkv = n // tq, n // tk

    kernel = functools.partial(_mha_kernel, heads=heads, head_dim=head_dim)

    itemsize = jnp.dtype(cdt).itemsize
    cost = pl.CostEstimate(
        flops=8 * b * n * d * d + 4 * b * heads * n * n * head_dim,
        transcendentals=b * heads * n * n,
        bytes_accessed=(3 * b * n * d + 4 * d * d) * itemsize,
    )

    return pl.pallas_call(
        kernel,
        out_shape=jax.ShapeDtypeStruct((b, n, d), x.dtype),
        grid_spec=pltpu.PrefetchScalarGridSpec(
            num_scalar_prefetch=0,
            grid=(b, nq, nkv),
            in_specs=[
                # x rows for the query tile (batch dim squeezed away)
                pl.BlockSpec((None, tq, d), lambda bi, qi, ki: (bi, qi, 0)),
                # x rows for the key/value tile
                pl.BlockSpec((None, tk, d), lambda bi, qi, ki: (bi, ki, 0)),
                # projection weights: constant block across the whole grid
                pl.BlockSpec((d, d), lambda bi, qi, ki: (0, 0)),       # Wq^T * scale
                pl.BlockSpec((d, 2 * d), lambda bi, qi, ki: (0, 0)),   # [Wk | Wv]^T
                pl.BlockSpec((d, d), lambda bi, qi, ki: (0, 0)),       # Wout^T
            ],
            out_specs=pl.BlockSpec((None, tq, d), lambda bi, qi, ki: (bi, qi, 0)),
            scratch_shapes=[
                pltpu.VMEM((tq, d), cdt),                         # pre-scaled Q
                pltpu.VMEM((heads, tq, 1), jnp.float32),          # running max
                pltpu.VMEM((heads, tq, 1), jnp.float32),          # running denom
                pltpu.VMEM((heads, tq, head_dim), jnp.float32),   # running P@V
            ]),
        compiler_params=pltpu.CompilerParams(
            dimension_semantics=("parallel", "parallel", "arbitrary"),
            vmem_limit_bytes=48 * 1024 * 1024),
        cost_estimate=cost,
    )(x, x, w_q, w_kv, w_o)


def mha_reference(x, w_qkv, w_out, heads):
    """Plain-JAX reference mirroring the PyTorch forward exactly."""
    b, n, d = x.shape
    head_dim = d // heads
    scale = float(head_dim) ** -0.5
    qkv = x @ w_qkv.T                                        # (B, N, 3D)
    q, k, v = jnp.split(qkv, 3, axis=-1)

    def split_heads(t):
        return jnp.transpose(t.reshape(b, n, heads, head_dim), (0, 2, 1, 3))

    q, k, v = split_heads(q), split_heads(k), split_heads(v)
    dots = jnp.einsum('bhid,bhjd->bhij', q, k) * scale
    attn = jax.nn.softmax(dots, axis=-1)
    out = jnp.einsum('bhij,bhjd->bhid', attn, v)
    out = jnp.transpose(out, (0, 2, 1, 3)).reshape(b, n, d)
    return out @ w_out.T


if __name__ == "__main__":
    key = jax.random.PRNGKey(0)
    kx, kq, ko = jax.random.split(key, 3)

    def run_case(B, N, D, HEADS, **tiles):
        x = jax.random.normal(kx, (B, N, D), dtype=jnp.float32)
        # Deterministic init mimicking nn.init.trunc_normal_(std=0.02), no bias.
        w_qkv = 0.02 * jax.random.truncated_normal(kq, -2.0, 2.0, (3 * D, D),
                                                   dtype=jnp.float32)
        w_out = 0.02 * jax.random.truncated_normal(ko, -2.0, 2.0, (D, D),
                                                   dtype=jnp.float32)
        out = jax.block_until_ready(mha_pallas(x, w_qkv, w_out, HEADS, **tiles))
        ref = mha_reference(x, w_qkv, w_out, HEADS)
        assert out.shape == (B, N, D)
        # pl.reciprocal(approx=True) introduces ~2^-12 relative error in the
        # softmax normalization; tolerance set accordingly.
        assert jnp.allclose(out, ref, atol=2e-4, rtol=2e-3), \
            float(jnp.max(jnp.abs(out - ref)))

    # Small shapes consistent with the LCT transformer block (dim % heads == 0).
    run_case(2, 8, 32, 4)
    # Multi-tile case: exercises the online-softmax accumulation across kv
    # tiles and multiple query tiles (nq=2, nkv=4).
    run_case(2, 128, 32, 4, q_tile=64, kv_tile=32)

    print("KERNEL_OK")
</pallas_src>

<mosaic_0001>
module attributes {stable_mosaic.version = 11 : i64} {
  func.func @_mha_kernel(%arg0: i32, %arg1: i32, %arg2: i32, %arg3: memref<1x8x32xf32, #tpu.memory_space<vmem>>, %arg4: memref<1x8x32xf32, #tpu.memory_space<vmem>>, %arg5: memref<32x32xf32, #tpu.memory_space<vmem>>, %arg6: memref<32x64xf32, #tpu.memory_space<vmem>>, %arg7: memref<32x32xf32, #tpu.memory_space<vmem>>, %arg8: memref<1x8x32xf32, #tpu.memory_space<vmem>>, %arg9: memref<8x32xf32, #tpu.memory_space<vmem>>, %arg10: memref<4x8x1xf32, #tpu.memory_space<vmem>>, %arg11: memref<4x8x1xf32, #tpu.memory_space<vmem>>, %arg12: memref<4x8x8xf32, #tpu.memory_space<vmem>>) attributes {dimension_semantics = [#tpu.dimension_semantics<parallel>, #tpu.dimension_semantics<parallel>, #tpu.dimension_semantics<arbitrary>], iteration_bounds = array<i64: 2, 1, 1>, scalar_prefetch = 0 : i64, scratch_operands = 4 : i64, tpu.core_type = #tpu.core_type<tc>, window_params = [{transform_indices = @transform_0, window_bounds = array<i64: 1, 8, 32>}, {transform_indices = @transform_1, window_bounds = array<i64: 1, 8, 32>}, {pipeline_mode = #tpu.pipeline_mode<synchronous>, transform_indices = @transform_2, window_bounds = array<i64: 32, 32>}, {pipeline_mode = #tpu.pipeline_mode<synchronous>, transform_indices = @transform_3, window_bounds = array<i64: 32, 64>}, {pipeline_mode = #tpu.pipeline_mode<synchronous>, transform_indices = @transform_4, window_bounds = array<i64: 32, 32>}, {transform_indices = @transform_5, window_bounds = array<i64: 1, 8, 32>}]} {
    %c0_i32 = arith.constant 0 : i32
    %0 = arith.cmpi eq, %arg2, %c0_i32 : i32
    %1 = arith.extui %0 : i1 to i32
    %c0_i32_0 = arith.constant 0 : i32
    %2 = arith.cmpi ne, %1, %c0_i32_0 : i32
    scf.if %2 {
      %c0_94 = arith.constant 0 : index
      %c0_95 = arith.constant 0 : index
      %c0_96 = arith.constant 0 : index
      %151 = vector.load %arg3[%c0_94, %c0_95, %c0_96] : memref<1x8x32xf32, #tpu.memory_space<vmem>>, vector<1x8x32xf32>
      %152 = vector.shape_cast %151 : vector<1x8x32xf32> to vector<8x32xf32>
      %c0_97 = arith.constant 0 : index
      %c0_98 = arith.constant 0 : index
      %153 = vector.load %arg5[%c0_97, %c0_98] : memref<32x32xf32, #tpu.memory_space<vmem>>, vector<32x32xf32>
      %cst_99 = arith.constant dense<0.000000e+00> : vector<8x32xf32>
      %154 = tpu.matmul %152, %153, %cst_99 {dimension_numbers = #tpu.dot_dimension_numbers<[1], [0], [0], [1], [0, 0, 1, 1], [], []>} : vector<8x32xf32>, vector<32x32xf32>, vector<8x32xf32> -> vector<8x32xf32>
      %c0_100 = arith.constant 0 : index
      %c0_101 = arith.constant 0 : index
      %155 = vector.load %arg9[%c0_100, %c0_101] : memref<8x32xf32, #tpu.memory_space<vmem>>, vector<8x32xf32>
      tpu.vector_store %arg9[%c0_100, %c0_101], %154 {strides = array<i32>} : memref<8x32xf32, #tpu.memory_space<vmem>>, vector<8x32xf32>,
      %cst_102 = arith.constant 0xFF800000 : f32
      %156 = vector.broadcast %cst_102 : f32 to vector<4x8x1xf32>
      %c0_103 = arith.constant 0 : index
      %c0_104 = arith.constant 0 : index
      %c0_105 = arith.constant 0 : index
      %157 = vector.load %arg10[%c0_103, %c0_104, %c0_105] : memref<4x8x1xf32, #tpu.memory_space<vmem>>, vector<4x8x1xf32>
      tpu.vector_store %arg10[%c0_103, %c0_104, %c0_105], %156 {strides = array<i32>} : memref<4x8x1xf32, #tpu.memory_space<vmem>>, vector<4x8x1xf32>,
      %cst_106 = arith.constant 0.000000e+00 : f32
      %158 = vector.broadcast %cst_106 : f32 to vector<4x8x1xf32>
      %c0_107 = arith.constant 0 : index
      %c0_108 = arith.constant 0 : index
      %c0_109 = arith.constant 0 : index
      %159 = vector.load %arg11[%c0_107, %c0_108, %c0_109] : memref<4x8x1xf32, #tpu.memory_space<vmem>>, vector<4x8x1xf32>
      tpu.vector_store %arg11[%c0_107, %c0_108, %c0_109], %158 {strides = array<i32>} : memref<4x8x1xf32, #tpu.memory_space<vmem>>, vector<4x8x1xf32>,
      %cst_110 = arith.constant 0.000000e+00 : f32
      %160 = vector.broadcast %cst_110 : f32 to vector<4x8x8xf32>
      %c0_111 = arith.constant 0 : index
      %c0_112 = arith.constant 0 : index
      %c0_113 = arith.constant 0 : index
      %161 = vector.load %arg12[%c0_111, %c0_112, %c0_113] : memref<4x8x8xf32, #tpu.memory_space<vmem>>, vector<4x8x8xf32>
      tpu.vector_store %arg12[%c0_111, %c0_112, %c0_113], %160 {strides = array<i32>} : memref<4x8x8xf32, #tpu.memory_space<vmem>>, vector<4x8x8xf32>,
    } else {
    }
    %c0 = arith.constant 0 : index
    %c0_1 = arith.constant 0 : index
    %c0_2 = arith.constant 0 : index
    %3 = vector.load %arg4[%c0, %c0_1, %c0_2] : memref<1x8x32xf32, #tpu.memory_space<vmem>>, vector<1x8x32xf32>
    %4 = vector.shape_cast %3 : vector<1x8x32xf32> to vector<8x32xf32>
    %c0_3 = arith.constant 0 : index
    %c0_4 = arith.constant 0 : index
    %5 = vector.load %arg6[%c0_3, %c0_4] : memref<32x64xf32, #tpu.memory_space<vmem>>, vector<32x64xf32>
    %cst = arith.constant dense<0.000000e+00> : vector<8x64xf32>
    %6 = tpu.matmul %4, %5, %cst {dimension_numbers = #tpu.dot_dimension_numbers<[1], [0], [0], [1], [0, 0, 1, 1], [], []>} : vector<8x32xf32>, vector<32x64xf32>, vector<8x64xf32> -> vector<8x64xf32>
    %c0_5 = arith.constant 0 : index
    %c0_6 = arith.constant 0 : index
    %7 = vector.load %arg9[%c0_5, %c0_6] : memref<8x32xf32, #tpu.memory_space<vmem>>, vector<8x32xf32>
    %8 = vector.extract_strided_slice %7 {offsets = [0, 0], sizes = [8, 8], strides = [1, 1]} : vector<8x32xf32> to vector<8x8xf32>
    %9 = vector.extract_strided_slice %6 {offsets = [0, 0], sizes = [8, 8], strides = [1, 1]} : vector<8x64xf32> to vector<8x8xf32>
    %10 = vector.extract_strided_slice %6 {offsets = [0, 32], sizes = [8, 8], strides = [1, 1]} : vector<8x64xf32> to vector<8x8xf32>
    %cst_7 = arith.constant dense<0.000000e+00> : vector<8x8xf32>
    %11 = tpu.matmul %8, %9, %cst_7 {dimension_numbers = #tpu.dot_dimension_numbers<[1], [1], [0], [0], [0, 0, 1, 0], [], []>} : vector<8x8xf32>, vector<8x8xf32>, vector<8x8xf32> -> vector<8x8xf32>
    %c0_8 = arith.constant 0 : index
    %c0_9 = arith.constant 0 : index
    %c0_10 = arith.constant 0 : index
    %12 = vector.load %arg10[%c0_8, %c0_9, %c0_10] : memref<4x8x1xf32, #tpu.memory_space<vmem>>, vector<1x8x1xf32>
    %13 = vector.shape_cast %12 : vector<1x8x1xf32> to vector<8x1xf32>
    %cst_11 = arith.constant dense<0xFF800000> : vector<8xf32>
    %14 = vector.multi_reduction <maximumf>, %11, %cst_11 [1] : vector<8x8xf32> to vector<8xf32>
    %15 = vector.shape_cast %14 : vector<8xf32> to vector<8x1xf32>
    %16 = arith.maximumf %13, %15 : vector<8x1xf32>
    %17 = arith.subf %13, %16 : vector<8x1xf32>
    %18 = math.exp %17 : vector<8x1xf32>
    %19 = vector.broadcast %16 : vector<8x1xf32> to vector<8x8xf32>
    %20 = arith.subf %11, %19 : vector<8x8xf32>
    %21 = math.exp %20 : vector<8x8xf32>
    %c0_12 = arith.constant 0 : index
    %c0_13 = arith.constant 0 : index
    %c0_14 = arith.constant 0 : index
    %22 = vector.load %arg11[%c0_12, %c0_13, %c0_14] : memref<4x8x1xf32, #tpu.memory_space<vmem>>, vector<1x8x1xf32>
    %23 = vector.shape_cast %22 : vector<1x8x1xf32> to vector<8x1xf32>
    %24 = arith.mulf %18, %23 : vector<8x1xf32>
    %cst_15 = arith.constant dense<0.000000e+00> : vector<8xf32>
    %25 = vector.multi_reduction <add>, %21, %cst_15 [1] : vector<8x8xf32> to vector<8xf32>
    %26 = vector.shape_cast %25 : vector<8xf32> to vector<8x1xf32>
    %27 = arith.addf %24, %26 : vector<8x1xf32>
    %c0_16 = arith.constant 0 : index
    %c0_17 = arith.constant 0 : index
    %c0_18 = arith.constant 0 : index
    %28 = vector.load %arg11[%c0_16, %c0_17, %c0_18] : memref<4x8x1xf32, #tpu.memory_space<vmem>>, vector<1x8x1xf32>
    %29 = vector.shape_cast %28 : vector<1x8x1xf32> to vector<8x1xf32>
    %30 = vector.shape_cast %27 : vector<8x1xf32> to vector<1x8x1xf32>
    tpu.vector_store %arg11[%c0_16, %c0_17, %c0_18], %30 {strides = array<i32>} : memref<4x8x1xf32, #tpu.memory_space<vmem>>, vector<1x8x1xf32>,
    %c0_19 = arith.constant 0 : index
    %c0_20 = arith.constant 0 : index
    %c0_21 = arith.constant 0 : index
    %31 = vector.load %arg12[%c0_19, %c0_20, %c0_21] : memref<4x8x8xf32, #tpu.memory_space<vmem>>, vector<1x8x8xf32>
    %32 = vector.shape_cast %31 : vector<1x8x8xf32> to vector<8x8xf32>
    %33 = vector.broadcast %18 : vector<8x1xf32> to vector<8x8xf32>
    %34 = arith.mulf %33, %32 : vector<8x8xf32>
    %cst_22 = arith.constant dense<0.000000e+00> : vector<8x8xf32>
    %35 = tpu.matmul %21, %10, %cst_22 {dimension_numbers = #tpu.dot_dimension_numbers<[1], [0], [0], [1], [0, 0, 1, 1], [], []>} : vector<8x8xf32>, vector<8x8xf32>, vector<8x8xf32> -> vector<8x8xf32>
    %36 = arith.addf %34, %35 : vector<8x8xf32>
    %c0_23 = arith.constant 0 : index
    %c0_24 = arith.constant 0 : index
    %c0_25 = arith.constant 0 : index
    %37 = vector.load %arg12[%c0_23, %c0_24, %c0_25] : memref<4x8x8xf32, #tpu.memory_space<vmem>>, vector<1x8x8xf32>
    %38 = vector.shape_cast %37 : vector<1x8x8xf32> to vector<8x8xf32>
    %39 = vector.shape_cast %36 : vector<8x8xf32> to vector<1x8x8xf32>
    tpu.vector_store %arg12[%c0_23, %c0_24, %c0_25], %39 {strides = array<i32>} : memref<4x8x8xf32, #tpu.memory_space<vmem>>, vector<1x8x8xf32>,
    %c0_26 = arith.constant 0 : index
    %c0_27 = arith.constant 0 : index
    %c0_28 = arith.constant 0 : index
    %40 = vector.load %arg10[%c0_26, %c0_27, %c0_28] : memref<4x8x1xf32, #tpu.memory_space<vmem>>, vector<1x8x1xf32>
    %41 = vector.shape_cast %40 : vector<1x8x1xf32> to vector<8x1xf32>
    %42 = vector.shape_cast %16 : vector<8x1xf32> to vector<1x8x1xf32>
    tpu.vector_store %arg10[%c0_26, %c0_27, %c0_28], %42 {strides = array<i32>} : memref<4x8x1xf32, #tpu.memory_space<vmem>>, vector<1x8x1xf32>,
    %43 = vector.extract_strided_slice %7 {offsets = [0, 8], sizes = [8, 8], strides = [1, 1]} : vector<8x32xf32> to vector<8x8xf32>
    %44 = vector.extract_strided_slice %6 {offsets = [0, 8], sizes = [8, 8], strides = [1, 1]} : vector<8x64xf32> to vector<8x8xf32>
    %45 = vector.extract_strided_slice %6 {offsets = [0, 40], sizes = [8, 8], strides = [1, 1]} : vector<8x64xf32> to vector<8x8xf32>
    %cst_29 = arith.constant dense<0.000000e+00> : vector<8x8xf32>
    %46 = tpu.matmul %43, %44, %cst_29 {dimension_numbers = #tpu.dot_dimension_numbers<[1], [1], [0], [0], [0, 0, 1, 0], [], []>} : vector<8x8xf32>, vector<8x8xf32>, vector<8x8xf32> -> vector<8x8xf32>
    %c1 = arith.constant 1 : index
    %c0_30 = arith.constant 0 : index
    %c0_31 = arith.constant 0 : index
    %47 = vector.load %arg10[%c1, %c0_30, %c0_31] : memref<4x8x1xf32, #tpu.memory_space<vmem>>, vector<1x8x1xf32>
    %48 = vector.shape_cast %47 : vector<1x8x1xf32> to vector<8x1xf32>
    %cst_32 = arith.constant dense<0xFF800000> : vector<8xf32>
    %49 = vector.multi_reduction <maximumf>, %46, %cst_32 [1] : vector<8x8xf32> to vector<8xf32>
    %50 = vector.shape_cast %49 : vector<8xf32> to vector<8x1xf32>
    %51 = arith.maximumf %48, %50 : vector<8x1xf32>
    %52 = arith.subf %48, %51 : vector<8x1xf32>
    %53 = math.exp %52 : vector<8x1xf32>
    %54 = vector.broadcast %51 : vector<8x1xf32> to vector<8x8xf32>
    %55 = arith.subf %46, %54 : vector<8x8xf32>
    %56 = math.exp %55 : vector<8x8xf32>
    %c1_33 = arith.constant 1 : index
    %c0_34 = arith.constant 0 : index
    %c0_35 = arith.constant 0 : index
    %57 = vector.load %arg11[%c1_33, %c0_34, %c0_35] : memref<4x8x1xf32, #tpu.memory_space<vmem>>, vector<1x8x1xf32>
    %58 = vector.shape_cast %57 : vector<1x8x1xf32> to vector<8x1xf32>
    %59 = arith.mulf %53, %58 : vector<8x1xf32>
    %cst_36 = arith.constant dense<0.000000e+00> : vector<8xf32>
    %60 = vector.multi_reduction <add>, %56, %cst_36 [1] : vector<8x8xf32> to vector<8xf32>
    %61 = vector.shape_cast %60 : vector<8xf32> to vector<8x1xf32>
    %62 = arith.addf %59, %61 : vector<8x1xf32>
    %c1_37 = arith.constant 1 : index
    %c0_38 = arith.constant 0 : index
    %c0_39 = arith.constant 0 : index
    %63 = vector.load %arg11[%c1_37, %c0_38, %c0_39] : memref<4x8x1xf32, #tpu.memory_space<vmem>>, vector<1x8x1xf32>
    %64 = vector.shape_cast %63 : vector<1x8x1xf32> to vector<8x1xf32>
    %65 = vector.shape_cast %62 : vector<8x1xf32> to vector<1x8x1xf32>
    tpu.vector_store %arg11[%c1_37, %c0_38, %c0_39], %65 {strides = array<i32>} : memref<4x8x1xf32, #tpu.memory_space<vmem>>, vector<1x8x1xf32>,
    %c1_40 = arith.constant 1 : index
    %c0_41 = arith.constant 0 : index
    %c0_42 = arith.constant 0 : index
    %66 = vector.load %arg12[%c1_40, %c0_41, %c0_42] : memref<4x8x8xf32, #tpu.memory_space<vmem>>, vector<1x8x8xf32>
    %67 = vector.shape_cast %66 : vector<1x8x8xf32> to vector<8x8xf32>
    %68 = vector.broadcast %53 : vector<8x1xf32> to vector<8x8xf32>
    %69 = arith.mulf %68, %67 : vector<8x8xf32>
    %cst_43 = arith.constant dense<0.000000e+00> : vector<8x8xf32>
    %70 = tpu.matmul %56, %45, %cst_43 {dimension_numbers = #tpu.dot_dimension_numbers<[1], [0], [0], [1], [0, 0, 1, 1], [], []>} : vector<8x8xf32>, vector<8x8xf32>, vector<8x8xf32> -> vector<8x8xf32>
    %71 = arith.addf %69, %70 : vector<8x8xf32>
    %c1_44 = arith.constant 1 : index
    %c0_45 = arith.constant 0 : index
    %c0_46 = arith.constant 0 : index
    %72 = vector.load %arg12[%c1_44, %c0_45, %c0_46] : memref<4x8x8xf32, #tpu.memory_space<vmem>>, vector<1x8x8xf32>
    %73 = vector.shape_cast %72 : vector<1x8x8xf32> to vector<8x8xf32>
    %74 = vector.shape_cast %71 : vector<8x8xf32> to vector<1x8x8xf32>
    tpu.vector_store %arg12[%c1_44, %c0_45, %c0_46], %74 {strides = array<i32>} : memref<4x8x8xf32, #tpu.memory_space<vmem>>, vector<1x8x8xf32>,
    %c1_47 = arith.constant 1 : index
    %c0_48 = arith.constant 0 : index
    %c0_49 = arith.constant 0 : index
    %75 = vector.load %arg10[%c1_47, %c0_48, %c0_49] : memref<4x8x1xf32, #tpu.memory_space<vmem>>, vector<1x8x1xf32>
    %76 = vector.shape_cast %75 : vector<1x8x1xf32> to vector<8x1xf32>
    %77 = vector.shape_cast %51 : vector<8x1xf32> to vector<1x8x1xf32>
    tpu.vector_store %arg10[%c1_47, %c0_48, %c0_49], %77 {strides = array<i32>} : memref<4x8x1xf32, #tpu.memory_space<vmem>>, vector<1x8x1xf32>,
    %78 = vector.extract_strided_slice %7 {offsets = [0, 16], sizes = [8, 8], strides = [1, 1]} : vector<8x32xf32> to vector<8x8xf32>
    %79 = vector.extract_strided_slice %6 {offsets = [0, 16], sizes = [8, 8], strides = [1, 1]} : vector<8x64xf32> to vector<8x8xf32>
    %80 = vector.extract_strided_slice %6 {offsets = [0, 48], sizes = [8, 8], strides = [1, 1]} : vector<8x64xf32> to vector<8x8xf32>
    %cst_50 = arith.constant dense<0.000000e+00> : vector<8x8xf32>
    %81 = tpu.matmul %78, %79, %cst_50 {dimension_numbers = #tpu.dot_dimension_numbers<[1], [1], [0], [0], [0, 0, 1, 0], [], []>} : vector<8x8xf32>, vector<8x8xf32>, vector<8x8xf32> -> vector<8x8xf32>
    %c2 = arith.constant 2 : index
    %c0_51 = arith.constant 0 : index
    %c0_52 = arith.constant 0 : index
    %82 = vector.load %arg10[%c2, %c0_51, %c0_52] : memref<4x8x1xf32, #tpu.memory_space<vmem>>, vector<1x8x1xf32>
    %83 = vector.shape_cast %82 : vector<1x8x1xf32> to vector<8x1xf32>
    %cst_53 = arith.constant dense<0xFF800000> : vector<8xf32>
    %84 = vector.multi_reduction <maximumf>, %81, %cst_53 [1] : vector<8x8xf32> to vector<8xf32>
    %85 = vector.shape_cast %84 : vector<8xf32> to vector<8x1xf32>
    %86 = arith.maximumf %83, %85 : vector<8x1xf32>
    %87 = arith.subf %83, %86 : vector<8x1xf32>
    %88 = math.exp %87 : vector<8x1xf32>
    %89 = vector.broadcast %86 : vector<8x1xf32> to vector<8x8xf32>
    %90 = arith.subf %81, %89 : vector<8x8xf32>
    %91 = math.exp %90 : vector<8x8xf32>
    %c2_54 = arith.constant 2 : index
    %c0_55 = arith.constant 0 : index
    %c0_56 = arith.constant 0 : index
    %92 = vector.load %arg11[%c2_54, %c0_55, %c0_56] : memref<4x8x1xf32, #tpu.memory_space<vmem>>, vector<1x8x1xf32>
    %93 = vector.shape_cast %92 : vector<1x8x1xf32> to vector<8x1xf32>
    %94 = arith.mulf %88, %93 : vector<8x1xf32>
    %cst_57 = arith.constant dense<0.000000e+00> : vector<8xf32>
    %95 = vector.multi_reduction <add>, %91, %cst_57 [1] : vector<8x8xf32> to vector<8xf32>
    %96 = vector.shape_cast %95 : vector<8xf32> to vector<8x1xf32>
    %97 = arith.addf %94, %96 : vector<8x1xf32>
    %c2_58 = arith.constant 2 : index
    %c0_59 = arith.constant 0 : index
    %c0_60 = arith.constant 0 : index
    %98 = vector.load %arg11[%c2_58, %c0_59, %c0_60] : memref<4x8x1xf32, #tpu.memory_space<vmem>>, vector<1x8x1xf32>
    %99 = vector.shape_cast %98 : vector<1x8x1xf32> to vector<8x1xf32>
    %100 = vector.shape_cast %97 : vector<8x1xf32> to vector<1x8x1xf32>
    tpu.vector_store %arg11[%c2_58, %c0_59, %c0_60], %100 {strides = array<i32>} : memref<4x8x1xf32, #tpu.memory_space<vmem>>, vector<1x8x1xf32>,
    %c2_61 = arith.constant 2 : index
    %c0_62 = arith.constant 0 : index
    %c0_63 = arith.constant 0 : index
    %101 = vector.load %arg12[%c2_61, %c0_62, %c0_63] : memref<4x8x8xf32, #tpu.memory_space<vmem>>, vector<1x8x8xf32>
    %102 = vector.shape_cast %101 : vector<1x8x8xf32> to vector<8x8xf32>
    %103 = vector.broadcast %88 : vector<8x1xf32> to vector<8x8xf32>
    %104 = arith.mulf %103, %102 : vector<8x8xf32>
    %cst_64 = arith.constant dense<0.000000e+00> : vector<8x8xf32>
    %105 = tpu.matmul %91, %80, %cst_64 {dimension_numbers = #tpu.dot_dimension_numbers<[1], [0], [0], [1], [0, 0, 1, 1], [], []>} : vector<8x8xf32>, vector<8x8xf32>, vector<8x8xf32> -> vector<8x8xf32>
    %106 = arith.addf %104, %105 : vector<8x8xf32>
    %c2_65 = arith.constant 2 : index
    %c0_66 = arith.constant 0 : index
    %c0_67 = arith.constant 0 : index
    %107 = vector.load %arg12[%c2_65, %c0_66, %c0_67] : memref<4x8x8xf32, #tpu.memory_space<vmem>>, vector<1x8x8xf32>
    %108 = vector.shape_cast %107 : vector<1x8x8xf32> to vector<8x8xf32>
    %109 = vector.shape_cast %106 : vector<8x8xf32> to vector<1x8x8xf32>
    tpu.vector_store %arg12[%c2_65, %c0_66, %c0_67], %109 {strides = array<i32>} : memref<4x8x8xf32, #tpu.memory_space<vmem>>, vector<1x8x8xf32>,
    %c2_68 = arith.constant 2 : index
    %c0_69 = arith.constant 0 : index
    %c0_70 = arith.constant 0 : index
    %110 = vector.load %arg10[%c2_68, %c0_69, %c0_70] : memref<4x8x1xf32, #tpu.memory_space<vmem>>, vector<1x8x1xf32>
    %111 = vector.shape_cast %110 : vector<1x8x1xf32> to vector<8x1xf32>
    %112 = vector.shape_cast %86 : vector<8x1xf32> to vector<1x8x1xf32>
    tpu.vector_store %arg10[%c2_68, %c0_69, %c0_70], %112 {strides = array<i32>} : memref<4x8x1xf32, #tpu.memory_space<vmem>>, vector<1x8x1xf32>,
    %113 = vector.extract_strided_slice %7 {offsets = [0, 24], sizes = [8, 8], strides = [1, 1]} : vector<8x32xf32> to vector<8x8xf32>
    %114 = vector.extract_strided_slice %6 {offsets = [0, 24], sizes = [8, 8], strides = [1, 1]} : vector<8x64xf32> to vector<8x8xf32>
    %115 = vector.extract_strided_slice %6 {offsets = [0, 56], sizes = [8, 8], strides = [1, 1]} : vector<8x64xf32> to vector<8x8xf32>
    %cst_71 = arith.constant dense<0.000000e+00> : vector<8x8xf32>
    %116 = tpu.matmul %113, %114, %cst_71 {dimension_numbers = #tpu.dot_dimension_numbers<[1], [1], [0], [0], [0, 0, 1, 0], [], []>} : vector<8x8xf32>, vector<8x8xf32>, vector<8x8xf32> -> vector<8x8xf32>
    %c3 = arith.constant 3 : index
    %c0_72 = arith.constant 0 : index
    %c0_73 = arith.constant 0 : index
    %117 = vector.load %arg10[%c3, %c0_72, %c0_73] : memref<4x8x1xf32, #tpu.memory_space<vmem>>, vector<1x8x1xf32>
    %118 = vector.shape_cast %117 : vector<1x8x1xf32> to vector<8x1xf32>
    %cst_74 = arith.constant dense<0xFF800000> : vector<8xf32>
    %119 = vector.multi_reduction <maximumf>, %116, %cst_74 [1] : vector<8x8xf32> to vector<8xf32>
    %120 = vector.shape_cast %119 : vector<8xf32> to vector<8x1xf32>
    %121 = arith.maximumf %118, %120 : vector<8x1xf32>
    %122 = arith.subf %118, %121 : vector<8x1xf32>
    %123 = math.exp %122 : vector<8x1xf32>
    %124 = vector.broadcast %121 : vector<8x1xf32> to vector<8x8xf32>
    %125 = arith.subf %116, %124 : vector<8x8xf32>
    %126 = math.exp %125 : vector<8x8xf32>
    %c3_75 = arith.constant 3 : index
    %c0_76 = arith.constant 0 : index
    %c0_77 = arith.constant 0 : index
    %127 = vector.load %arg11[%c3_75, %c0_76, %c0_77] : memref<4x8x1xf32, #tpu.memory_space<vmem>>, vector<1x8x1xf32>
    %128 = vector.shape_cast %127 : vector<1x8x1xf32> to vector<8x1xf32>
    %129 = arith.mulf %123, %128 : vector<8x1xf32>
    %cst_78 = arith.constant dense<0.000000e+00> : vector<8xf32>
    %130 = vector.multi_reduction <add>, %126, %cst_78 [1] : vector<8x8xf32> to vector<8xf32>
    %131 = vector.shape_cast %130 : vector<8xf32> to vector<8x1xf32>
    %132 = arith.addf %129, %131 : vector<8x1xf32>
    %c3_79 = arith.constant 3 : index
    %c0_80 = arith.constant 0 : index
    %c0_81 = arith.constant 0 : index
    %133 = vector.load %arg11[%c3_79, %c0_80, %c0_81] : memref<4x8x1xf32, #tpu.memory_space<vmem>>, vector<1x8x1xf32>
    %134 = vector.shape_cast %133 : vector<1x8x1xf32> to vector<8x1xf32>
    %135 = vector.shape_cast %132 : vector<8x1xf32> to vector<1x8x1xf32>
    tpu.vector_store %arg11[%c3_79, %c0_80, %c0_81], %135 {strides = array<i32>} : memref<4x8x1xf32, #tpu.memory_space<vmem>>, vector<1x8x1xf32>,
    %c3_82 = arith.constant 3 : index
    %c0_83 = arith.constant 0 : index
    %c0_84 = arith.constant 0 : index
    %136 = vector.load %arg12[%c3_82, %c0_83, %c0_84] : memref<4x8x8xf32, #tpu.memory_space<vmem>>, vector<1x8x8xf32>
    %137 = vector.shape_cast %136 : vector<1x8x8xf32> to vector<8x8xf32>
    %138 = vector.broadcast %123 : vector<8x1xf32> to vector<8x8xf32>
    %139 = arith.mulf %138, %137 : vector<8x8xf32>
    %cst_85 = arith.constant dense<0.000000e+00> : vector<8x8xf32>
    %140 = tpu.matmul %126, %115, %cst_85 {dimension_numbers = #tpu.dot_dimension_numbers<[1], [0], [0], [1], [0, 0, 1, 1], [], []>} : vector<8x8xf32>, vector<8x8xf32>, vector<8x8xf32> -> vector<8x8xf32>
    %141 = arith.addf %139, %140 : vector<8x8xf32>
    %c3_86 = arith.constant 3 : index
    %c0_87 = arith.constant 0 : index
    %c0_88 = arith.constant 0 : index
    %142 = vector.load %arg12[%c3_86, %c0_87, %c0_88] : memref<4x8x8xf32, #tpu.memory_space<vmem>>, vector<1x8x8xf32>
    %143 = vector.shape_cast %142 : vector<1x8x8xf32> to vector<8x8xf32>
    %144 = vector.shape_cast %141 : vector<8x8xf32> to vector<1x8x8xf32>
    tpu.vector_store %arg12[%c3_86, %c0_87, %c0_88], %144 {strides = array<i32>} : memref<4x8x8xf32, #tpu.memory_space<vmem>>, vector<1x8x8xf32>,
    %c3_89 = arith.constant 3 : index
    %c0_90 = arith.constant 0 : index
    %c0_91 = arith.constant 0 : index
    %145 = vector.load %arg10[%c3_89, %c0_90, %c0_91] : memref<4x8x1xf32, #tpu.memory_space<vmem>>, vector<1x8x1xf32>
    %146 = vector.shape_cast %145 : vector<1x8x1xf32> to vector<8x1xf32>
    %147 = vector.shape_cast %121 : vector<8x1xf32> to vector<1x8x1xf32>
    tpu.vector_store %arg10[%c3_89, %c0_90, %c0_91], %147 {strides = array<i32>} : memref<4x8x1xf32, #tpu.memory_space<vmem>>, vector<1x8x1xf32>,
    %c0_i32_92 = arith.constant 0 : i32
    %148 = arith.cmpi eq, %arg2, %c0_i32_92 : i32
    %149 = arith.extui %148 : i1 to i32
    %c0_i32_93 = arith.constant 0 : i32
    %150 = arith.cmpi ne, %149, %c0_i32_93 : i32
    scf.if %150 {
      %cst_94 = arith.constant 0.000000e+00 : f32
      %151 = vector.broadcast %cst_94 : f32 to vector<8x32xf32>
      %c0_95 = arith.constant 0 : index
      %c0_96 = arith.constant 0 : index
      %c0_97 = arith.constant 0 : index
      %152 = vector.load %arg12[%c0_95, %c0_96, %c0_97] : memref<4x8x8xf32, #tpu.memory_space<vmem>>, vector<1x8x8xf32>
      %153 = vector.shape_cast %152 : vector<1x8x8xf32> to vector<8x8xf32>
      %c0_98 = arith.constant 0 : index
      %c0_99 = arith.constant 0 : index
      %c0_100 = arith.constant 0 : index
      %154 = vector.load %arg11[%c0_98, %c0_99, %c0_100] : memref<4x8x1xf32, #tpu.memory_space<vmem>>, vector<1x8x1xf32>
      %155 = vector.shape_cast %154 : vector<1x8x1xf32> to vector<8x1xf32>
      %156 = tpu.reciprocal %155 {approx = true} : vector<8x1xf32> -> vector<8x1xf32>
      %157 = vector.broadcast %156 : vector<8x1xf32> to vector<8x8xf32>
      %158 = arith.mulf %153, %157 : vector<8x8xf32>
      %c0_101 = arith.constant 0 : index
      %c0_102 = arith.constant 0 : index
      %159 = vector.load %arg7[%c0_101, %c0_102] : memref<32x32xf32, #tpu.memory_space<vmem>>, vector<8x32xf32>
      %cst_103 = arith.constant dense<0.000000e+00> : vector<8x32xf32>
      %160 = tpu.matmul %158, %159, %cst_103 {dimension_numbers = #tpu.dot_dimension_numbers<[1], [0], [0], [1], [0, 0, 1, 1], [], []>} : vector<8x8xf32>, vector<8x32xf32>, vector<8x32xf32> -> vector<8x32xf32>
      %161 = arith.addf %151, %160 : vector<8x32xf32>
      %c1_104 = arith.constant 1 : index
      %c0_105 = arith.constant 0 : index
      %c0_106 = arith.constant 0 : index
      %162 = vector.load %arg12[%c1_104, %c0_105, %c0_106] : memref<4x8x8xf32, #tpu.memory_space<vmem>>, vector<1x8x8xf32>
      %163 = vector.shape_cast %162 : vector<1x8x8xf32> to vector<8x8xf32>
      %c1_107 = arith.constant 1 : index
      %c0_108 = arith.constant 0 : index
      %c0_109 = arith.constant 0 : index
      %164 = vector.load %arg11[%c1_107, %c0_108, %c0_109] : memref<4x8x1xf32, #tpu.memory_space<vmem>>, vector<1x8x1xf32>
      %165 = vector.shape_cast %164 : vector<1x8x1xf32> to vector<8x1xf32>
      %166 = tpu.reciprocal %165 {approx = true} : vector<8x1xf32> -> vector<8x1xf32>
      %167 = vector.broadcast %166 : vector<8x1xf32> to vector<8x8xf32>
      %168 = arith.mulf %163, %167 : vector<8x8xf32>
      %c8 = arith.constant 8 : index
      %c0_110 = arith.constant 0 : index
      %169 = vector.load %arg7[%c8, %c0_110] : memref<32x32xf32, #tpu.memory_space<vmem>>, vector<8x32xf32>
      %cst_111 = arith.constant dense<0.000000e+00> : vector<8x32xf32>
      %170 = tpu.matmul %168, %169, %cst_111 {dimension_numbers = #tpu.dot_dimension_numbers<[1], [0], [0], [1], [0, 0, 1, 1], [], []>} : vector<8x8xf32>, vector<8x32xf32>, vector<8x32xf32> -> vector<8x32xf32>
      %171 = arith.addf %161, %170 : vector<8x32xf32>
      %c2_112 = arith.constant 2 : index
      %c0_113 = arith.constant 0 : index
      %c0_114 = arith.constant 0 : index
      %172 = vector.load %arg12[%c2_112, %c0_113, %c0_114] : memref<4x8x8xf32, #tpu.memory_space<vmem>>, vector<1x8x8xf32>
      %173 = vector.shape_cast %172 : vector<1x8x8xf32> to vector<8x8xf32>
      %c2_115 = arith.constant 2 : index
      %c0_116 = arith.constant 0 : index
      %c0_117 = arith.constant 0 : index
      %174 = vector.load %arg11[%c2_115, %c0_116, %c0_117] : memref<4x8x1xf32, #tpu.memory_space<vmem>>, vector<1x8x1xf32>
      %175 = vector.shape_cast %174 : vector<1x8x1xf32> to vector<8x1xf32>
      %176 = tpu.reciprocal %175 {approx = true} : vector<8x1xf32> -> vector<8x1xf32>
      %177 = vector.broadcast %176 : vector<8x1xf32> to vector<8x8xf32>
      %178 = arith.mulf %173, %177 : vector<8x8xf32>
      %c16 = arith.constant 16 : index
      %c0_118 = arith.constant 0 : index
      %179 = vector.load %arg7[%c16, %c0_118] : memref<32x32xf32, #tpu.memory_space<vmem>>, vector<8x32xf32>
      %cst_119 = arith.constant dense<0.000000e+00> : vector<8x32xf32>
      %180 = tpu.matmul %178, %179, %cst_119 {dimension_numbers = #tpu.dot_dimension_numbers<[1], [0], [0], [1], [0, 0, 1, 1], [], []>} : vector<8x8xf32>, vector<8x32xf32>, vector<8x32xf32> -> vector<8x32xf32>
      %181 = arith.addf %171, %180 : vector<8x32xf32>
      %c3_120 = arith.constant 3 : index
      %c0_121 = arith.constant 0 : index
      %c0_122 = arith.constant 0 : index
      %182 = vector.load %arg12[%c3_120, %c0_121, %c0_122] : memref<4x8x8xf32, #tpu.memory_space<vmem>>, vector<1x8x8xf32>
      %183 = vector.shape_cast %182 : vector<1x8x8xf32> to vector<8x8xf32>
      %c3_123 = arith.constant 3 : index
      %c0_124 = arith.constant 0 : index
      %c0_125 = arith.constant 0 : index
      %184 = vector.load %arg11[%c3_123, %c0_124, %c0_125] : memref<4x8x1xf32, #tpu.memory_space<vmem>>, vector<1x8x1xf32>
      %185 = vector.shape_cast %184 : vector<1x8x1xf32> to vector<8x1xf32>
      %186 = tpu.reciprocal %185 {approx = true} : vector<8x1xf32> -> vector<8x1xf32>
      %187 = vector.broadcast %186 : vector<8x1xf32> to vector<8x8xf32>
      %188 = arith.mulf %183, %187 : vector<8x8xf32>
      %c24 = arith.constant 24 : index
      %c0_126 = arith.constant 0 : index
      %189 = vector.load %arg7[%c24, %c0_126] : memref<32x32xf32, #tpu.memory_space<vmem>>, vector<8x32xf32>
      %cst_127 = arith.constant dense<0.000000e+00> : vector<8x32xf32>
      %190 = tpu.matmul %188, %189, %cst_127 {dimension_numbers = #tpu.dot_dimension_numbers<[1], [0], [0], [1], [0, 0, 1, 1], [], []>} : vector<8x8xf32>, vector<8x32xf32>, vector<8x32xf32> -> vector<8x32xf32>
      %191 = arith.addf %181, %190 : vector<8x32xf32>
      %c0_128 = arith.constant 0 : index
      %c0_129 = arith.constant 0 : index
      %c0_130 = arith.constant 0 : index
      %192 = vector.load %arg8[%c0_128, %c0_129, %c0_130] : memref<1x8x32xf32, #tpu.memory_space<vmem>>, vector<1x8x32xf32>
      %193 = vector.shape_cast %192 : vector<1x8x32xf32> to vector<8x32xf32>
      %194 = vector.shape_cast %191 : vector<8x32xf32> to vector<1x8x32xf32>
      tpu.vector_store %arg8[%c0_128, %c0_129, %c0_130], %194 {strides = array<i32>} : memref<1x8x32xf32, #tpu.memory_space<vmem>>, vector<1x8x32xf32>,
    } else {
    }
    return
  }
  func.func @transform_0(%arg0: i32, %arg1: i32, %arg2: i32) -> (i32, i32, i32) {
    %c0_i32 = arith.constant 0 : i32
    %c0_i32_0 = arith.constant 0 : i32
    return %arg0, %arg1, %c0_i32 : i32, i32, i32
  }
  func.func @transform_1(%arg0: i32, %arg1: i32, %arg2: i32) -> (i32, i32, i32) {
    %c0_i32 = arith.constant 0 : i32
    %c0_i32_0 = arith.constant 0 : i32
    return %arg0, %arg2, %c0_i32 : i32, i32, i32
  }
  func.func @transform_2(%arg0: i32, %arg1: i32, %arg2: i32) -> (i32, i32) {
    %c0_i32 = arith.constant 0 : i32
    %c0_i32_0 = arith.constant 0 : i32
    %c0_i32_1 = arith.constant 0 : i32
    return %c0_i32, %c0_i32_0 : i32, i32
  }
  func.func @transform_3(%arg0: i32, %arg1: i32, %arg2: i32) -> (i32, i32) {
    %c0_i32 = arith.constant 0 : i32
    %c0_i32_0 = arith.constant 0 : i32
    %c0_i32_1 = arith.constant 0 : i32
    return %c0_i32, %c0_i32_0 : i32, i32
  }
  func.func @transform_4(%arg0: i32, %arg1: i32, %arg2: i32) -> (i32, i32) {
    %c0_i32 = arith.constant 0 : i32
    %c0_i32_0 = arith.constant 0 : i32
    %c0_i32_1 = arith.constant 0 : i32
    return %c0_i32, %c0_i32_0 : i32, i32
  }
  func.func @transform_5(%arg0: i32, %arg1: i32, %arg2: i32) -> (i32, i32, i32) {
    %c0_i32 = arith.constant 0 : i32
    %c0_i32_0 = arith.constant 0 : i32
    return %arg0, %arg1, %c0_i32 : i32, i32, i32
  }
}

</mosaic_0001>

<llo_original>
// kernel: tpu_custom_call.1
$region0: #{tpu_custom_call.1}
  #allocation0 [shape = 'u32[]', space=smem, size = 0x4, offset = 0x4, fixed_abs, tag = 'smem constant byte address 0x4 - core index']
  #allocation1 [shape = 'u32[144,128]{1,0:T(1,128)}', space=vmem, size = 0x12000, scoped, tag = 'internal scratch']
  #allocation2 [shape = 'f32[8,32]{1,0:T(8,128)}', space=vmem, size = 0x1000, scoped, tag = 'scratch operand']
  #allocation3 [shape = 'f32[4,8,1]{2,1,0:T(8,128)}', space=vmem, size = 0x4000, scoped, tag = 'scratch operand']
  #allocation4 [shape = 'f32[4,8,1]{2,1,0:T(8,128)}', space=vmem, size = 0x4000, scoped, tag = 'scratch operand']
  #allocation5 [shape = 'f32[4,8,8]{2,1,0:T(8,128)}', space=vmem, size = 0x4000, scoped, tag = 'scratch operand']
  %s0 = inlined_call_operand.hbm [shape: f32[2,8,32], index: 0, kind: input, shape index: {}]
  %s1 = inlined_call_operand.hbm [shape: f32[2,8,32], index: 1, kind: input, shape index: {}]
  %s2 = inlined_call_operand.hbm [shape: f32[32,32], index: 2, kind: input, shape index: {}]
  %s3 = inlined_call_operand.hbm [shape: f32[32,64], index: 3, kind: input, shape index: {}]
  %s4 = inlined_call_operand.hbm [shape: f32[32,32], index: 4, kind: input, shape index: {}]
  %s5 = inlined_call_operand.hbm [shape: f32[2,8,32], index: 5, kind: output, shape index: {}]
  %s6 = sld [smem:[#allocation0]]
  $region81: #{tpu_custom_call.1} parent=0
    _
  %s8 = ssub.s32 1, %s6
  %s9 = scalar_select 0, %s8, %s6
  $region1: #{tpu_custom_call.1} parent=0
    #allocation6 [shape = 'u8[8192]{0}', space=vmem, size = 0x2000, scoped, tag = 'input window, operand 0']
    #allocation7 [shape = 's32[2]{0}', space=sflag, size = 0x8, scoped, tag = 'scoped memory for tpu_custom_call.1']
    #allocation8 [shape = 's32[2]{0}', space=sflag, size = 0x8, scoped, tag = 'scoped memory for tpu_custom_call.1']
    #allocation9 [shape = 'u8[8192]{0}', space=vmem, size = 0x2000, scoped, tag = 'input window, operand 1']
    #allocation10 [shape = 's32[2]{0}', space=sflag, size = 0x8, scoped, tag = 'scoped memory for tpu_custom_call.1']
    #allocation11 [shape = 'u8[16384]{0}', space=vmem, size = 0x4000, scoped, tag = 'input window, operand 2, single buffered']
    #allocation12 [shape = 'u8[16384]{0}', space=vmem, size = 0x4000, scoped, tag = 'input window, operand 3, single buffered']
    #allocation13 [shape = 's32[1]{0}', space=sflag, size = 0x4, scoped, tag = 'scoped memory for tpu_custom_call.1']
    #allocation14 [shape = 'u8[16384]{0}', space=vmem, size = 0x4000, scoped, tag = 'input window, operand 4, single buffered']
    #allocation15 [shape = 'u8[8192]{0}', space=vmem, size = 0x2000, scoped, tag = 'output window, operand 0']
    %10 = vsyncpa [#allocation7], 0
    %s11 = scalar_lea.sflag [#allocation7], 1
    %12 = vsyncpa %s11, 0
    %13 = vsyncpa [#allocation10], 0
    %s14 = scalar_lea.sflag [#allocation10], 1
    %15 = vsyncpa %s14, 0
    %16 = vsyncpa [#allocation13], 0
    %17 = vsyncpa [#allocation8], 0
    %s18 = scalar_lea.sflag [#allocation8], 1
    %19 = vsyncpa %s18, 0
    loop: start=0, step=1, limit=4
    $region2: #{tpu_custom_call.1} parent=1 // loop_pre_header
      _
    $region3: #{tpu_custom_call.1} parent=1 // loop_header
      %s21 = sphi 0, %s25
      %p22 = scmp.ge.s32.totalorder %s21, 4
      %s28 = sphi 0, %s47
      %s29 = sphi 0, %s43
      %s30 = sphi 0, %s39
      %s31 = sphi 0, %s28
      %s32 = sphi 0, %s29
      %s33 = sphi 0, %s30
      %s34 = sphi 0, %s31
      %s35 = sphi 0, %s32
      %s36 = sphi 0, %s33
      %s52 = sphi 0, %s54
      %s55 = sphi 0, %s52
      %s56 = sphi 0, %s55
      %s72 = sphi 0, %s56
      %s80 = sphi 0, %s82
      %s83 = sphi 0, %s80
      %s84 = sphi 0, %s83
      %s100 = sphi 0, %s84
      %s104 = sphi 0, %s104
      %s106 = sphi 0, %s104
      %s107 = sphi 0, %s106
      %s121 = sphi 0, %s107
      %s125 = sphi 0, %s125
      %s127 = sphi 0, %s125
      %s128 = sphi 0, %s127
      %s142 = sphi 0, %s128
      %s146 = sphi 0, %s146
      %s148 = sphi 0, %s146
      %s149 = sphi 0, %s148
      %s163 = sphi 0, %s149
      %s171 = sphi 0, %s173
      %s174 = sphi 0, %s171
      %s175 = sphi 0, %s174
      %s191 = sphi 0, %s175
    $region4: #{tpu_custom_call.1} parent=1 // loop_header_branch
      %24 = sbr.rel (%p22) target = $region8
    $region5: #{tpu_custom_call.1} parent=1 // loop_body
      %s26 = ssub.s32 %s21, 1
      %s27 = ssub.s32 %s21, 2
      %s37 = sadd.s32 1, %s30
      %p38 = scmp.ge.s32.totalorder %s37, 1
      %s39 = scalar_select %p38, 0, %s37
      %s40 = sadd.s32 1, %s29
      %s41 = scalar_select %p38, %s40, %s29
      %p42 = scmp.ge.s32.totalorder %s41, 1
      %s43 = scalar_select %p42, 0, %s41
      %s44 = sadd.s32 1, %s28
      %s45 = scalar_select %p42, %s44, %s28
      %p46 = scmp.ge.s32.totalorder %s45, 2
      %s47 = scalar_select %p46, 0, %s45
      %s48 = ssub.s32 %s28, %s47
      %s49 = ssub.s32 %s29, %s43
      %s50 = sor.u32 %s48, %s49
      %p51 = scmp.eq.s32.totalorder %s50, 0
      %s53 = sadd.s32 %s52, 1
      %s54 = scalar_select %p51, %s52, %s53
      %p57 = pneg %p51
      %p58 = scmp.eq.s32.totalorder %s21, 1
      %p59 = por %p57, %p58
      %p60 = scmp.ne.s32.totalorder %s52, %s55
      %p61 = scmp.eq.s32.totalorder %s21, 0
      %p62 = por %p60, %p61
      %p63 = scmp.ne.s32.totalorder %s52, %s55
      %p64 = scmp.eq.s32.totalorder %s26, 1
      %p65 = por %p63, %p64
      %p66 = scmp.ne.s32.totalorder %s55, %s56
      %p67 = scmp.eq.s32.totalorder %s26, 0
      %p68 = por %p66, %p67
      %p69 = scmp.ne.s32.totalorder %s55, %s56
      %p70 = scmp.eq.s32.totalorder %s27, 1
      %p71 = por %p69, %p70
      %p73 = scmp.ne.s32.totalorder %s56, %s72
      %p74 = scmp.eq.s32.totalorder %s27, 0
      %p75 = por %p73, %p74
      %s76 = ssub.s32 %s28, %s47
      %s77 = ssub.s32 %s30, %s39
      %s78 = sor.u32 %s76, %s77
      %p79 = scmp.eq.s32.totalorder %s78, 0
      %s81 = sadd.s32 %s80, 1
      %s82 = scalar_select %p79, %s80, %s81
      %p85 = pneg %p79
      %p86 = scmp.eq.s32.totalorder %s21, 1
      %p87 = por %p85, %p86
      %p88 = scmp.ne.s32.totalorder %s80, %s83
      %p89 = scmp.eq.s32.totalorder %s21, 0
      %p90 = por %p88, %p89
      %p91 = scmp.ne.s32.totalorder %s80, %s83
      %p92 = scmp.eq.s32.totalorder %s26, 1
      %p93 = por %p91, %p92
      %p94 = scmp.ne.s32.totalorder %s83, %s84
      %p95 = scmp.eq.s32.totalorder %s26, 0
      %p96 = por %p94, %p95
      %p97 = scmp.ne.s32.totalorder %s83, %s84
      %p98 = scmp.eq.s32.totalorder %s27, 1
      %p99 = por %p97, %p98
      %p101 = scmp.ne.s32.totalorder %s84, %s100
      %p102 = scmp.eq.s32.totalorder %s27, 0
      %p103 = por %p101, %p102
      %s105 = sadd.s32 %s104, 1
      %p108 = scmp.eq.s32.totalorder %s21, 1
      %p109 = scmp.ne.s32.totalorder %s104, %s106
      %p110 = scmp.eq.s32.totalorder %s21, 0
      %p111 = por %p109, %p110
      %p112 = scmp.ne.s32.totalorder %s104, %s106
      %p113 = scmp.eq.s32.totalorder %s26, 1
      %p114 = por %p112, %p113
      %p115 = scmp.ne.s32.totalorder %s106, %s107
      %p116 = scmp.eq.s32.totalorder %s26, 0
      %p117 = por %p115, %p116
      %p118 = scmp.ne.s32.totalorder %s106, %s107
      %p119 = scmp.eq.s32.totalorder %s27, 1
      %p120 = por %p118, %p119
      %p122 = scmp.ne.s32.totalorder %s107, %s121
      %p123 = scmp.eq.s32.totalorder %s27, 0
      %p124 = por %p122, %p123
      %s126 = sadd.s32 %s125, 1
      %p129 = scmp.eq.s32.totalorder %s21, 1
      %p130 = scmp.ne.s32.totalorder %s125, %s127
      %p131 = scmp.eq.s32.totalorder %s21, 0
      %p132 = por %p130, %p131
      %p133 = scmp.ne.s32.totalorder %s125, %s127
      %p134 = scmp.eq.s32.totalorder %s26, 1
      %p135 = por %p133, %p134
      %p136 = scmp.ne.s32.totalorder %s127, %s128
      %p137 = scmp.eq.s32.totalorder %s26, 0
      %p138 = por %p136, %p137
      %p139 = scmp.ne.s32.totalorder %s127, %s128
      %p140 = scmp.eq.s32.totalorder %s27, 1
      %p141 = por %p139, %p140
      %p143 = scmp.ne.s32.totalorder %s128, %s142
      %p144 = scmp.eq.s32.totalorder %s27, 0
      %p145 = por %p143, %p144
      %s147 = sadd.s32 %s146, 1
      %p150 = scmp.eq.s32.totalorder %s21, 1
      %p151 = scmp.ne.s32.totalorder %s146, %s148
      %p152 = scmp.eq.s32.totalorder %s21, 0
      %p153 = por %p151, %p152
      %p154 = scmp.ne.s32.totalorder %s146, %s148
      %p155 = scmp.eq.s32.totalorder %s26, 1
      %p156 = por %p154, %p155
      %p157 = scmp.ne.s32.totalorder %s148, %s149
      %p158 = scmp.eq.s32.totalorder %s26, 0
      %p159 = por %p157, %p158
      %p160 = scmp.ne.s32.totalorder %s148, %s149
      %p161 = scmp.eq.s32.totalorder %s27, 1
      %p162 = por %p160, %p161
      %p164 = scmp.ne.s32.totalorder %s149, %s163
      %p165 = scmp.eq.s32.totalorder %s27, 0
      %p166 = por %p164, %p165
      %s167 = ssub.s32 %s28, %s47
      %s168 = ssub.s32 %s29, %s43
      %s169 = sor.u32 %s167, %s168
      %p170 = scmp.eq.s32.totalorder %s169, 0
      %s172 = sadd.s32 %s171, 1
      %s173 = scalar_select %p170, %s171, %s172
      %p176 = pneg %p170
      %p177 = scmp.eq.s32.totalorder %s21, 1
      %p178 = por %p176, %p177
      %p179 = scmp.ne.s32.totalorder %s171, %s174
      %p180 = scmp.eq.s32.totalorder %s21, 0
      %p181 = por %p179, %p180
      %p182 = scmp.ne.s32.totalorder %s171, %s174
      %p183 = scmp.eq.s32.totalorder %s26, 1
      %p184 = por %p182, %p183
      %p185 = scmp.ne.s32.totalorder %s174, %s175
      %p186 = scmp.eq.s32.totalorder %s26, 0
      %p187 = por %p185, %p186
      %p188 = scmp.ne.s32.totalorder %s174, %s175
      %p189 = scmp.eq.s32.totalorder %s27, 1
      %p190 = por %p188, %p189
      %p192 = scmp.ne.s32.totalorder %s175, %s191
      %p193 = scmp.eq.s32.totalorder %s27, 0
      %p194 = por %p192, %p193
      %p195 = scmp.le.s32.totalorder 1, %s21
      %p196 = scmp.lt.s32.totalorder %s21, 3
      %p197 = pnand %p195, %p196
      %p198 = pneg %p197
      // Predicated region
      $region9: #{tpu_custom_call.1} parent=5 // pred_check
        _
      $region10: #{tpu_custom_call.1} parent=5 // pred_check_branch
        %200 = sbr.rel (%p197) target = $region12
      $region11: #{tpu_custom_call.1} parent=5 // pred_region
        %s201 = ssub.s32 %s21, 1
        // Predicated region
        $region13: #{tpu_custom_call.1} parent=11 // pred_check
          %p202 = pneg %p117
        $region14: #{tpu_custom_call.1} parent=11 // pred_check_branch
          %204 = sbr.rel (%p202) target = $region16
        $region15: #{tpu_custom_call.1} parent=11 // pred_region
          %s206 = ssub.s32 512, 512
          %207 = vsyncadd [#allocation10], %s206
          %s208 = sshll.u32 [#allocation11], 4
          %s209 = int_to_ptr.vmem [resolvable:$true] %s208
          %214 = dma.hbm_to_vmem [thread:$0]  %s2, 512, %s209, [#allocation10], 128, 128, 8
        $region16: #{tpu_custom_call.1} parent=11 // pred_fallthru
          _
        // Predicated region
        $region17: #{tpu_custom_call.1} parent=11 // pred_check
          %p215 = pneg %p138
        $region18: #{tpu_custom_call.1} parent=11 // pred_check_branch
          %217 = sbr.rel (%p215) target = $region20
        $region19: #{tpu_custom_call.1} parent=11 // pred_region
          %s219 = ssub.s32 512, 512
          %220 = vsyncadd [#allocation13], %s219
          %s221 = sshll.u32 [#allocation12], 4
          %s222 = int_to_ptr.vmem [resolvable:$true] %s221
          %227 = dma.hbm_to_vmem [thread:$0]  %s3, 512, %s222, [#allocation13], 128, 128, 8
        $region20: #{tpu_custom_call.1} parent=11 // pred_fallthru
          _
        // Predicated region
        $region21: #{tpu_custom_call.1} parent=11 // pred_check
          %p228 = pneg %p159
        $region22: #{tpu_custom_call.1} parent=11 // pred_check_branch
          %230 = sbr.rel (%p228) target = $region24
        $region23: #{tpu_custom_call.1} parent=11 // pred_region
          %s232 = ssub.s32 512, 512
          %233 = vsyncadd [#allocation13], %s232
          %s234 = sshll.u32 [#allocation14], 4
          %s235 = int_to_ptr.vmem [resolvable:$true] %s234
          %240 = dma.hbm_to_vmem [thread:$0]  %s4, 512, %s235, [#allocation13], 128, 128, 8
        $region24: #{tpu_custom_call.1} parent=11 // pred_fallthru
          _
      $region12: #{tpu_custom_call.1} parent=5 // pred_fallthru
        _
      %p241 = scmp.lt.s32.totalorder %s21, 2
      // Predicated region
      $region25: #{tpu_custom_call.1} parent=5 // pred_check
        %p242 = pneg %p241
      $region26: #{tpu_custom_call.1} parent=5 // pred_check_branch
        %244 = sbr.rel (%p242) target = $region28
      $region27: #{tpu_custom_call.1} parent=5 // pred_region
        // Predicated region
        $region29: #{tpu_custom_call.1} parent=27 // pred_check
          %p245 = pneg %p62
        $region30: #{tpu_custom_call.1} parent=27 // pred_check_branch
          %247 = sbr.rel (%p245) target = $region32
        $region31: #{tpu_custom_call.1} parent=27 // pred_region
          %s248 = sand.u32 %s52, 1
          %s249 = scalar_lea.sflag [#allocation7], %s248
          %s250 = sand.u32 %s52, 1
          %s251 = smul.addr %s250, 8
          %s252 = scalar_lea.vmem [#allocation6], %s251
          %s254 = ssub.s32 128, 128
          %255 = vsyncadd %s249, %s254
          %s256 = sadd.s32 %s29, %s28
          %s257 = smul.addr %s256, 128
          %s258 = scalar_lea.hbm %s0, %s257
          %s260 = sshll.u32 %s252, 4
          %s261 = int_to_ptr.vmem [resolvable:$true] %s260
          %263 = dma.hbm_to_vmem [thread:$0]  %s258, 128, %s261, %s249
        $region32: #{tpu_custom_call.1} parent=27 // pred_fallthru
          _
        // Predicated region
        $region33: #{tpu_custom_call.1} parent=27 // pred_check
          %p264 = pneg %p90
        $region34: #{tpu_custom_call.1} parent=27 // pred_check_branch
          %266 = sbr.rel (%p264) target = $region36
        $region35: #{tpu_custom_call.1} parent=27 // pred_region
          %s267 = sand.u32 %s21, 1
          %s268 = scalar_lea.sflag [#allocation10], %s267
          %s269 = sand.u32 %s80, 1
          %s270 = smul.addr %s269, 8
          %s271 = scalar_lea.vmem [#allocation9], %s270
          %s273 = ssub.s32 128, 128
          %274 = vsyncadd %s268, %s273
          %s275 = sadd.s32 %s30, %s28
          %s276 = smul.addr %s275, 128
          %s277 = scalar_lea.hbm %s1, %s276
          %s279 = sshll.u32 %s271, 4
          %s280 = int_to_ptr.vmem [resolvable:$true] %s279
          %282 = dma.hbm_to_vmem [thread:$0]  %s277, 128, %s280, %s268
        $region36: #{tpu_custom_call.1} parent=27 // pred_fallthru
          _
      $region28: #{tpu_custom_call.1} parent=5 // pred_fallthru
        _
      %p283 = scmp.le.s32.totalorder 1, %s21
      %p284 = scmp.lt.s32.totalorder %s21, 3
      %p285 = pnand %p283, %p284
      %p286 = pneg %p285
      // Predicated region
      $region37: #{tpu_custom_call.1} parent=5 // pred_check
        _
      $region38: #{tpu_custom_call.1} parent=5 // pred_check_branch
        %288 = sbr.rel (%p285) target = $region40
      $region39: #{tpu_custom_call.1} parent=5 // pred_region
        %s289 = ssub.s32 %s21, 1
        %s290 = sand.u32 %s55, 1
        %s291 = scalar_lea.sflag [#allocation7], %s290
        %s292 = sand.u32 %s55, 1
        %s293 = smul.addr %s292, 8
        %s294 = scalar_lea.vmem [#allocation6], %s293
        // Predicated region
        $region41: #{tpu_custom_call.1} parent=39 // pred_check
          %p295 = pneg %p68
        $region42: #{tpu_custom_call.1} parent=39 // pred_check_branch
          %297 = sbr.rel (%p295) target = $region44
        $region43: #{tpu_custom_call.1} parent=39 // pred_region
          %298 = dma.done %s291, 128
        $region44: #{tpu_custom_call.1} parent=39 // pred_fallthru
          _
        %s299 = sand.u32 %s26, 1
        %s300 = scalar_lea.sflag [#allocation10], %s299
        %s301 = sand.u32 %s83, 1
        %s302 = smul.addr %s301, 8
        %s303 = scalar_lea.vmem [#allocation9], %s302
        // Predicated region
        $region45: #{tpu_custom_call.1} parent=39 // pred_check
          %p304 = pneg %p96
        $region46: #{tpu_custom_call.1} parent=39 // pred_check_branch
          %306 = sbr.rel (%p304) target = $region48
        $region47: #{tpu_custom_call.1} parent=39 // pred_region
          %307 = dma.done %s300, 128
        $region48: #{tpu_custom_call.1} parent=39 // pred_fallthru
          _
        // Predicated region
        $region49: #{tpu_custom_call.1} parent=39 // pred_check
          %p308 = pneg %p117
        $region50: #{tpu_custom_call.1} parent=39 // pred_check_branch
          %310 = sbr.rel (%p308) target = $region52
        $region51: #{tpu_custom_call.1} parent=39 // pred_region
          %311 = dma.done [#allocation10], 512
        $region52: #{tpu_custom_call.1} parent=39 // pred_fallthru
          _
        // Predicated region
        $region53: #{tpu_custom_call.1} parent=39 // pred_check
          %p312 = pneg %p138
        $region54: #{tpu_custom_call.1} parent=39 // pred_check_branch
          %314 = sbr.rel (%p312) target = $region56
        $region55: #{tpu_custom_call.1} parent=39 // pred_region
          %315 = dma.done [#allocation13], 512
        $region56: #{tpu_custom_call.1} parent=39 // pred_fallthru
          _
        // Predicated region
        $region57: #{tpu_custom_call.1} parent=39 // pred_check
          %p316 = pneg %p159
        $region58: #{tpu_custom_call.1} parent=39 // pred_check_branch
          %318 = sbr.rel (%p316) target = $region60
        $region59: #{tpu_custom_call.1} parent=39 // pred_region
          %319 = dma.done [#allocation13], 512
        $region60: #{tpu_custom_call.1} parent=39 // pred_fallthru
          _
        %s320 = sand.u32 %s55, 1
        %s321 = scalar_lea.sflag [#allocation7], %s320
        %s322 = sand.u32 %s55, 1
        %s323 = smul.addr %s322, 8
        %s324 = scalar_lea.vmem [#allocation6], %s323
        %p325 = pneg %p68
        %p326 = pneg %p65
        %s327 = sand.u32 %s26, 1
        %s328 = scalar_lea.sflag [#allocation10], %s327
        %s329 = sand.u32 %s83, 1
        %s330 = smul.addr %s329, 8
        %s331 = scalar_lea.vmem [#allocation9], %s330
        %p332 = pneg %p96
        %p333 = pneg %p93
        %p334 = pneg %p117
        %p335 = pneg %p114
        %p336 = pneg %p138
        %p337 = pneg %p135
        %p338 = pneg %p159
        %p339 = pneg %p156
        %p340 = pneg %p187
        %p341 = pneg %p184
        %s342 = sand.u32 %s174, 1
        %s343 = scalar_lea.sflag [#allocation8], %s342
        %s344 = sand.u32 %s174, 1
        %s345 = smul.addr %s344, 8
        %s346 = scalar_lea.vmem [#allocation15], %s345
        %p347 = scmp.eq.s32.totalorder %s33, 0
        // Predicated region
        $region61: #{tpu_custom_call.1} parent=39 // pred_check
          %p348 = pneg %p347
        $region62: #{tpu_custom_call.1} parent=39 // pred_check_branch
          %350 = sbr.rel (%p348) target = $region64
        $region63: #{tpu_custom_call.1} parent=39 // pred_region
          %v351 = vld [vmem:[%s294] sm:$0xff]
          %v352 = vld [vmem:[#allocation11] sm:$0xff]
          %v353 = vld [vmem:[#allocation11 + $0x8] sm:$0xff]
          %v354 = vld [vmem:[#allocation11 + $0x10] sm:$0xff]
          %v355 = vld [vmem:[#allocation11 + $0x18] sm:$0xff]
          %vm356 = vcmask 261120
          %v358 = vsel %vm356, %v351, 0
          %360 = vmatprep.subr.mxu0 0.0
          %361 = vmatpush1.msra.mxu0 %v352
          %362 = vmatprep.subr.mxu0 0.0
          %363 = vmatpush1.msra.mxu0 %v353
          %364 = vmatprep.subr.mxu0 0.0
          %365 = vmatpush1.msra.mxu0 %v354
          %366 = vmatprep.subr.mxu0 0.0
          %367 = vmatpush1.msra.mxu0 %v355
          %368 = vmatprep.subr.mxu0 0.0
          %369 = vmatpush1.msra.mxu0 0.0
          %370 = vmatprep.subr.mxu0 0.0
          %371 = vmatpush1.msra.mxu0 0.0
          %372 = vmatprep.subr.mxu0 0.0
          %373 = vmatpush1.msra.mxu0 0.0
          %374 = vmatprep.subr.mxu0 0.0
          %375 = vmatpush1.msra.mxu0 0.0
          %376 = vmatprep.subr.mxu0 0.0
          %377 = vmatpush1.msra.mxu0 0.0
          %378 = vmatprep.subr.mxu0 0.0
          %379 = vmatpush1.msra.mxu0 0.0
          %380 = vmatprep.subr.mxu0 0.0
          %381 = vmatpush1.msra.mxu0 0.0
          %382 = vmatprep.subr.mxu0 0.0
          %383 = vmatpush1.msra.mxu0 0.0
          %384 = vmatprep.subr.mxu0 0.0
          %385 = vmatpush1.msra.mxu0 0.0
          %386 = vmatprep.subr.mxu0 0.0
          %387 = vmatpush1.msra.mxu0 0.0
          %388 = vmatprep.subr.mxu0 0.0
          %389 = vmatpush1.msra.mxu0 0.0
          %390 = vmatprep.subr.mxu0 0.0
          %391 = vmatpush1.msra.mxu0 0.0
          %392 = vmatprep.subr.mxu0 0.0
          %393 = vmatpush1.msra.mxu0 0.0
          %394 = vmatprep.subr.mxu0 0.0
          %395 = vmatpush1.msra.mxu0 0.0
          %396 = vmatprep.subr.mxu0 0.0
          %397 = vmatpush1.msra.mxu0 0.0
          %398 = vmatprep.subr.mxu0 0.0
          %399 = vmatpush1.msra.mxu0 0.0
          %400 = vmatprep.subr.mxu0 0.0
          %401 = vmatpush1.msra.mxu0 0.0
          %402 = vmatprep.subr.mxu0 0.0
          %403 = vmatpush1.msra.mxu0 0.0
          %404 = vmatprep.subr.mxu0 0.0
          %405 = vmatpush1.msra.mxu0 0.0
          %406 = vmatprep.subr.mxu0 0.0
          %407 = vmatpush1.msra.mxu0 0.0
          %408 = vmatprep.subr.mxu0 0.0
          %409 = vmatpush1.msra.mxu0 0.0
          %410 = vmatprep.subr.mxu0 0.0
          %411 = vmatpush1.msra.mxu0 0.0
          %412 = vmatprep.subr.mxu0 0.0
          %413 = vmatpush1.msra.mxu0 0.0
          %414 = vmatprep.subr.mxu0 0.0
          %415 = vmatpush1.msra.mxu0 0.0
          %416 = vmatprep.subr.mxu0 0.0
          %417 = vmatpush1.msra.mxu0 0.0
          %418 = vmatprep.subr.mxu0 0.0
          %419 = vmatpush1.msra.mxu0 0.0
          %420 = vmatprep.subr.mxu0 0.0
          %421 = vmatpush1.msra.mxu0 0.0
          %422 = vmatprep.subr.mxu0 0.0
          %423 = vmatpush1.msra.mxu0 0.0
          %424 = vmatprep.mubr.f32.mxu0 0.0
          %425 = vmatmul.mubr.f32.gmra.mrb[0].mxu0 %v358
          %v426 = vpop.f32.mrb[0].mxu0
          %v427 = vadd.f32 0.0, %v426
          %v428 = vpop.f32.mrb[0].mxu0
          %429 = vdwg.mxu0
          %430 = vst.msk [vmem:[#allocation2] sm:$0xff] %vm356, %v427
          %vm431 = vcmask 7168
          %432 = vst.msk [vmem:[#allocation3] sm:$0xff] %vm431, -inf
          %433 = vst.msk [vmem:[#allocation3 + $0x8] sm:$0xff] %vm431, -inf
          %434 = vst.msk [vmem:[#allocation3 + $0x10] sm:$0xff] %vm431, -inf
          %435 = vst.msk [vmem:[#allocation3 + $0x18] sm:$0xff] %vm431, -inf
          %436 = vst.msk [vmem:[#allocation4] sm:$0xff] %vm431, 0.0
          %437 = vst.msk [vmem:[#allocation4 + $0x8] sm:$0xff] %vm431, 0.0
          %438 = vst.msk [vmem:[#allocation4 + $0x10] sm:$0xff] %vm431, 0.0
          %439 = vst.msk [vmem:[#allocation4 + $0x18] sm:$0xff] %vm431, 0.0
          %vm440 = vcmask 64512
          %441 = vst.msk [vmem:[#allocation5] sm:$0xff] %vm440, 0.0
          %442 = vst.msk [vmem:[#allocation5 + $0x8] sm:$0xff] %vm440, 0.0
          %443 = vst.msk [vmem:[#allocation5 + $0x10] sm:$0xff] %vm440, 0.0
          %444 = vst.msk [vmem:[#allocation5 + $0x18] sm:$0xff] %vm440, 0.0
        $region64: #{tpu_custom_call.1} parent=39 // pred_fallthru
          _
        %v445 = vld [vmem:[%s303] sm:$0xff]
        %v446 = vld [vmem:[#allocation12] sm:$0xff]
        %v447 = vld [vmem:[#allocation12 + $0x8] sm:$0xff]
        %v448 = vld [vmem:[#allocation12 + $0x10] sm:$0xff]
        %v449 = vld [vmem:[#allocation12 + $0x18] sm:$0xff]
        %vm450 = vcmask 261120
        %v452 = vsel %vm450, %v445, 0
        %454 = vmatprep.subr.mxu0 0.0
        %455 = vmatpush1.msra.mxu0 %v446
        %456 = vmatprep.subr.mxu0 0.0
        %457 = vmatpush1.msra.mxu0 %v447
        %458 = vmatprep.subr.mxu0 0.0
        %459 = vmatpush1.msra.mxu0 %v448
        %460 = vmatprep.subr.mxu0 0.0
        %461 = vmatpush1.msra.mxu0 %v449
        %462 = vmatprep.subr.mxu0 0.0
        %463 = vmatpush1.msra.mxu0 0.0
        %464 = vmatprep.subr.mxu0 0.0
        %465 = vmatpush1.msra.mxu0 0.0
        %466 = vmatprep.subr.mxu0 0.0
        %467 = vmatpush1.msra.mxu0 0.0
        %468 = vmatprep.subr.mxu0 0.0
        %469 = vmatpush1.msra.mxu0 0.0
        %470 = vmatprep.subr.mxu0 0.0
        %471 = vmatpush1.msra.mxu0 0.0
        %472 = vmatprep.subr.mxu0 0.0
        %473 = vmatpush1.msra.mxu0 0.0
        %474 = vmatprep.subr.mxu0 0.0
        %475 = vmatpush1.msra.mxu0 0.0
        %476 = vmatprep.subr.mxu0 0.0
        %477 = vmatpush1.msra.mxu0 0.0
        %478 = vmatprep.subr.mxu0 0.0
        %479 = vmatpush1.msra.mxu0 0.0
        %480 = vmatprep.subr.mxu0 0.0
        %481 = vmatpush1.msra.mxu0 0.0
        %482 = vmatprep.subr.mxu0 0.0
        %483 = vmatpush1.msra.mxu0 0.0
        %484 = vmatprep.subr.mxu0 0.0
        %485 = vmatpush1.msra.mxu0 0.0
        %486 = vmatprep.subr.mxu0 0.0
        %487 = vmatpush1.msra.mxu0 0.0
        %488 = vmatprep.subr.mxu0 0.0
        %489 = vmatpush1.msra.mxu0 0.0
        %490 = vmatprep.subr.mxu0 0.0
        %491 = vmatpush1.msra.mxu0 0.0
        %492 = vmatprep.subr.mxu0 0.0
        %493 = vmatpush1.msra.mxu0 0.0
        %494 = vmatprep.subr.mxu0 0.0
        %495 = vmatpush1.msra.mxu0 0.0
        %496 = vmatprep.subr.mxu0 0.0
        %497 = vmatpush1.msra.mxu0 0.0
        %498 = vmatprep.subr.mxu0 0.0
        %499 = vmatpush1.msra.mxu0 0.0
        %500 = vmatprep.subr.mxu0 0.0
        %501 = vmatpush1.msra.mxu0 0.0
        %502 = vmatprep.subr.mxu0 0.0
        %503 = vmatpush1.msra.mxu0 0.0
        %504 = vmatprep.subr.mxu0 0.0
        %505 = vmatpush1.msra.mxu0 0.0
        %506 = vmatprep.subr.mxu0 0.0
        %507 = vmatpush1.msra.mxu0 0.0
        %508 = vmatprep.subr.mxu0 0.0
        %509 = vmatpush1.msra.mxu0 0.0
        %510 = vmatprep.subr.mxu0 0.0
        %511 = vmatpush1.msra.mxu0 0.0
        %512 = vmatprep.subr.mxu0 0.0
        %513 = vmatpush1.msra.mxu0 0.0
        %514 = vmatprep.subr.mxu0 0.0
        %515 = vmatpush1.msra.mxu0 0.0
        %516 = vmatprep.subr.mxu0 0.0
        %517 = vmatpush1.msra.mxu0 0.0
        %518 = vmatprep.mubr.f32.mxu0 0.0
        %519 = vmatmul.mubr.f32.gmra.mrb[0].mxu0 %v452
        %v520 = vpop.f32.mrb[0].mxu0
        %v521 = vadd.f32 0.0, %v520
        %v522 = vpop.f32.mrb[0].mxu0
        %523 = vdwg.mxu0
        %v524 = vld [vmem:[#allocation2] sm:$0xff]
        %vm525 = vcmask 64512
        %v527 = vsel %vm525, %v524, 0
        %v530 = vsel %vm525, %v521, 0
        %532 = vmatprep.subr.mxu0 0.0
        %533 = vmatpush1.xpose.msra.mxu0 %v530
        %534 = vmatprep.subr.mxu0 0.0
        %535 = vmatpush1.xpose.msra.mxu0 0.0
        %536 = vmatprep.subr.mxu0 0.0
        %537 = vmatpush1.xpose.msra.mxu0 0.0
        %538 = vmatprep.subr.mxu0 0.0
        %539 = vmatpush1.xpose.msra.mxu0 0.0
        %540 = vmatprep.subr.mxu0 0.0
        %541 = vmatpush1.xpose.msra.mxu0 0.0
        %542 = vmatprep.subr.mxu0 0.0
        %543 = vmatpush1.xpose.msra.mxu0 0.0
        %544 = vmatprep.subr.mxu0 0.0
        %545 = vmatpush1.xpose.msra.mxu0 0.0
        %546 = vmatprep.subr.mxu0 0.0
        %547 = vmatpush1.xpose.msra.mxu0 0.0
        %548 = vmatprep.subr.mxu0 0.0
        %549 = vmatpush1.xpose.msra.mxu0 0.0
        %550 = vmatprep.subr.mxu0 0.0
        %551 = vmatpush1.xpose.msra.mxu0 0.0
        %552 = vmatprep.subr.mxu0 0.0
        %553 = vmatpush1.xpose.msra.mxu0 0.0
        %554 = vmatprep.subr.mxu0 0.0
        %555 = vmatpush1.xpose.msra.mxu0 0.0
        %556 = vmatprep.subr.mxu0 0.0
        %557 = vmatpush1.xpose.msra.mxu0 0.0
        %558 = vmatprep.subr.mxu0 0.0
        %559 = vmatpush1.xpose.msra.mxu0 0.0
        %560 = vmatprep.subr.mxu0 0.0
        %561 = vmatpush1.xpose.msra.mxu0 0.0
        %562 = vmatprep.subr.mxu0 0.0
        %563 = vmatpush1.xpose.msra.mxu0 0.0
        %564 = vmatprep.subr.mxu0 0.0
        %565 = vmatpush1.xpose.msra.mxu0 0.0
        %566 = vmatprep.subr.mxu0 0.0
        %567 = vmatpush1.xpose.msra.mxu0 0.0
        %568 = vmatprep.subr.mxu0 0.0
        %569 = vmatpush1.xpose.msra.mxu0 0.0
        %570 = vmatprep.subr.mxu0 0.0
        %571 = vmatpush1.xpose.msra.mxu0 0.0
        %572 = vmatprep.subr.mxu0 0.0
        %573 = vmatpush1.xpose.msra.mxu0 0.0
        %574 = vmatprep.subr.mxu0 0.0
        %575 = vmatpush1.xpose.msra.mxu0 0.0
        %576 = vmatprep.subr.mxu0 0.0
        %577 = vmatpush1.xpose.msra.mxu0 0.0
        %578 = vmatprep.subr.mxu0 0.0
        %579 = vmatpush1.xpose.msra.mxu0 0.0
        %580 = vmatprep.subr.mxu0 0.0
        %581 = vmatpush1.xpose.msra.mxu0 0.0
        %582 = vmatprep.subr.mxu0 0.0
        %583 = vmatpush1.xpose.msra.mxu0 0.0
        %584 = vmatprep.subr.mxu0 0.0
        %585 = vmatpush1.xpose.msra.mxu0 0.0
        %586 = vmatprep.subr.mxu0 0.0
        %587 = vmatpush1.xpose.msra.mxu0 0.0
        %588 = vmatprep.subr.mxu0 0.0
        %589 = vmatpush1.xpose.msra.mxu0 0.0
        %590 = vmatprep.subr.mxu0 0.0
        %591 = vmatpush1.xpose.msra.mxu0 0.0
        %592 = vmatprep.subr.mxu0 0.0
        %593 = vmatpush1.xpose.msra.mxu0 0.0
        %594 = vmatprep.subr.mxu0 0.0
        %595 = vmatpush1.xpose.msra.mxu0 0.0
        %596 = vmatprep.mubr.f32.mxu0 0.0
        %597 = vmatmul.mubr.f32.gmra.mrb[0].mxu0 %v527
        %v598 = vpop.f32.mrb[0].mxu0
        %v599 = vadd.f32 0.0, %v598
        %v600 = vpop.f32.mrb[0].mxu0
        %601 = vdwg.mxu0
        %v602 = vld [vmem:[#allocation3] sm:$0xff]
        %v603 = vsel %vm525, %v599, -inf
        %604 = vmax.xlane.f32.xlu0 %v603
        %v605 = vpop.xlane.xlu0 %604
        %v606 = vmax.f32 %v602, %v605
        %v607 = vsub.f32 %v602, %v606
        %v608 = vmul.f32 %v607, 1.442695
        %v609 = vpow.pop %v608
        %611 = vset.pattern.permute.xlu0 0
        %612 = vperm.xlu0 %611, %v606
        %v613 = vpop.permute.xlu0 %612
        %v615 = vsub.f32 %v599, %v613
        %v616 = vmul.f32 %v615, 1.442695
        %v617 = vpow.pop %v616
        %v618 = vld [vmem:[#allocation4] sm:$0xff]
        %v619 = vmul.f32 %v609, %v618
        %v620 = vsel %vm525, %v617, 0.0
        %621 = vadd.xlane.f32.xlu0 %v620
        %v622 = vpop.xlane.xlu0 %621
        %v623 = vadd.f32 %v619, %v622
        %vm624 = vcmask 7168
        %625 = vst.msk [vmem:[#allocation4] sm:$0xff] %vm624, %v623
        %v626 = vld [vmem:[#allocation5] sm:$0xff]
        %628 = vset.pattern.permute.xlu0 0
        %629 = vperm.xlu0 %628, %v609
        %v630 = vpop.permute.xlu0 %629
        %v632 = vmul.f32 %v630, %v626
        %633 = vrot.lane.b32.xlu0 %v521, 96
        %v634 = vpop.permute.xlu0 %633
        %v637 = vsel %vm525, %v617, 0
        %639 = vmatprep.subr.mxu0 0.0
        %640 = vmatpush1.msra.mxu0 %v634
        %641 = vmatprep.subr.mxu0 0.0
        %642 = vmatpush1.msra.mxu0 0.0
        %643 = vmatprep.subr.mxu0 0.0
        %644 = vmatpush1.msra.mxu0 0.0
        %645 = vmatprep.subr.mxu0 0.0
        %646 = vmatpush1.msra.mxu0 0.0
        %647 = vmatprep.subr.mxu0 0.0
        %648 = vmatpush1.msra.mxu0 0.0
        %649 = vmatprep.subr.mxu0 0.0
        %650 = vmatpush1.msra.mxu0 0.0
        %651 = vmatprep.subr.mxu0 0.0
        %652 = vmatpush1.msra.mxu0 0.0
        %653 = vmatprep.subr.mxu0 0.0
        %654 = vmatpush1.msra.mxu0 0.0
        %655 = vmatprep.subr.mxu0 0.0
        %656 = vmatpush1.msra.mxu0 0.0
        %657 = vmatprep.subr.mxu0 0.0
        %658 = vmatpush1.msra.mxu0 0.0
        %659 = vmatprep.subr.mxu0 0.0
        %660 = vmatpush1.msra.mxu0 0.0
        %661 = vmatprep.subr.mxu0 0.0
        %662 = vmatpush1.msra.mxu0 0.0
        %663 = vmatprep.subr.mxu0 0.0
        %664 = vmatpush1.msra.mxu0 0.0
        %665 = vmatprep.subr.mxu0 0.0
        %666 = vmatpush1.msra.mxu0 0.0
        %667 = vmatprep.subr.mxu0 0.0
        %668 = vmatpush1.msra.mxu0 0.0
        %669 = vmatprep.subr.mxu0 0.0
        %670 = vmatpush1.msra.mxu0 0.0
        %671 = vmatprep.subr.mxu0 0.0
        %672 = vmatpush1.msra.mxu0 0.0
        %673 = vmatprep.subr.mxu0 0.0
        %674 = vmatpush1.msra.mxu0 0.0
        %675 = vmatprep.subr.mxu0 0.0
        %676 = vmatpush1.msra.mxu0 0.0
        %677 = vmatprep.subr.mxu0 0.0
        %678 = vmatpush1.msra.mxu0 0.0
        %679 = vmatprep.subr.mxu0 0.0
        %680 = vmatpush1.msra.mxu0 0.0
        %681 = vmatprep.subr.mxu0 0.0
        %682 = vmatpush1.msra.mxu0 0.0
        %683 = vmatprep.subr.mxu0 0.0
        %684 = vmatpush1.msra.mxu0 0.0
        %685 = vmatprep.subr.mxu0 0.0
        %686 = vmatpush1.msra.mxu0 0.0
        %687 = vmatprep.subr.mxu0 0.0
        %688 = vmatpush1.msra.mxu0 0.0
        %689 = vmatprep.subr.mxu0 0.0
        %690 = vmatpush1.msra.mxu0 0.0
        %691 = vmatprep.subr.mxu0 0.0
        %692 = vmatpush1.msra.mxu0 0.0
        %693 = vmatprep.subr.mxu0 0.0
        %694 = vmatpush1.msra.mxu0 0.0
        %695 = vmatprep.subr.mxu0 0.0
        %696 = vmatpush1.msra.mxu0 0.0
        %697 = vmatprep.subr.mxu0 0.0
        %698 = vmatpush1.msra.mxu0 0.0
        %699 = vmatprep.subr.mxu0 0.0
        %700 = vmatpush1.msra.mxu0 0.0
        %701 = vmatprep.subr.mxu0 0.0
        %702 = vmatpush1.msra.mxu0 0.0
        %703 = vmatprep.mubr.f32.mxu0 0.0
        %704 = vmatmul.mubr.f32.gmra.mrb[0].mxu0 %v637
        %v705 = vpop.f32.mrb[0].mxu0
        %v706 = vadd.f32 0.0, %v705
        %v707 = vpop.f32.mrb[0].mxu0
        %708 = vdwg.mxu0
        %v709 = vadd.f32 %v632, %v706
        %710 = vst.msk [vmem:[#allocation5] sm:$0xff] %vm525, %v709
        %711 = vst.msk [vmem:[#allocation3] sm:$0xff] %vm624, %v606
        %712 = vrot.lane.b32.xlu0 %v524, 120
        %v713 = vpop.permute.xlu0 %712
        %714 = vrot.lane.b32.xlu0 %v521, 120
        %v715 = vpop.permute.xlu0 %714
        %v716 = vsel %vm525, %v713, 0
        %v718 = vsel %vm525, %v715, 0
        %720 = vmatprep.subr.mxu0 0.0
        %721 = vmatpush1.xpose.msra.mxu0 %v718
        %722 = vmatprep.subr.mxu0 0.0
        %723 = vmatpush1.xpose.msra.mxu0 0.0
        %724 = vmatprep.subr.mxu0 0.0
        %725 = vmatpush1.xpose.msra.mxu0 0.0
        %726 = vmatprep.subr.mxu0 0.0
        %727 = vmatpush1.xpose.msra.mxu0 0.0
        %728 = vmatprep.subr.mxu0 0.0
        %729 = vmatpush1.xpose.msra.mxu0 0.0
        %730 = vmatprep.subr.mxu0 0.0
        %731 = vmatpush1.xpose.msra.mxu0 0.0
        %732 = vmatprep.subr.mxu0 0.0
        %733 = vmatpush1.xpose.msra.mxu0 0.0
        %734 = vmatprep.subr.mxu0 0.0
        %735 = vmatpush1.xpose.msra.mxu0 0.0
        %736 = vmatprep.subr.mxu0 0.0
        %737 = vmatpush1.xpose.msra.mxu0 0.0
        %738 = vmatprep.subr.mxu0 0.0
        %739 = vmatpush1.xpose.msra.mxu0 0.0
        %740 = vmatprep.subr.mxu0 0.0
        %741 = vmatpush1.xpose.msra.mxu0 0.0
        %742 = vmatprep.subr.mxu0 0.0
        %743 = vmatpush1.xpose.msra.mxu0 0.0
        %744 = vmatprep.subr.mxu0 0.0
        %745 = vmatpush1.xpose.msra.mxu0 0.0
        %746 = vmatprep.subr.mxu0 0.0
        %747 = vmatpush1.xpose.msra.mxu0 0.0
        %748 = vmatprep.subr.mxu0 0.0
        %749 = vmatpush1.xpose.msra.mxu0 0.0
        %750 = vmatprep.subr.mxu0 0.0
        %751 = vmatpush1.xpose.msra.mxu0 0.0
        %752 = vmatprep.subr.mxu0 0.0
        %753 = vmatpush1.xpose.msra.mxu0 0.0
        %754 = vmatprep.subr.mxu0 0.0
        %755 = vmatpush1.xpose.msra.mxu0 0.0
        %756 = vmatprep.subr.mxu0 0.0
        %757 = vmatpush1.xpose.msra.mxu0 0.0
        %758 = vmatprep.subr.mxu0 0.0
        %759 = vmatpush1.xpose.msra.mxu0 0.0
        %760 = vmatprep.subr.mxu0 0.0
        %761 = vmatpush1.xpose.msra.mxu0 0.0
        %762 = vmatprep.subr.mxu0 0.0
        %763 = vmatpush1.xpose.msra.mxu0 0.0
        %764 = vmatprep.subr.mxu0 0.0
        %765 = vmatpush1.xpose.msra.mxu0 0.0
        %766 = vmatprep.subr.mxu0 0.0
        %767 = vmatpush1.xpose.msra.mxu0 0.0
        %768 = vmatprep.subr.mxu0 0.0
        %769 = vmatpush1.xpose.msra.mxu0 0.0
        %770 = vmatprep.subr.mxu0 0.0
        %771 = vmatpush1.xpose.msra.mxu0 0.0
        %772 = vmatprep.subr.mxu0 0.0
        %773 = vmatpush1.xpose.msra.mxu0 0.0
        %774 = vmatprep.subr.mxu0 0.0
        %775 = vmatpush1.xpose.msra.mxu0 0.0
        %776 = vmatprep.subr.mxu0 0.0
        %777 = vmatpush1.xpose.msra.mxu0 0.0
        %778 = vmatprep.subr.mxu0 0.0
        %779 = vmatpush1.xpose.msra.mxu0 0.0
        %780 = vmatprep.subr.mxu0 0.0
        %781 = vmatpush1.xpose.msra.mxu0 0.0
        %782 = vmatprep.subr.mxu0 0.0
        %783 = vmatpush1.xpose.msra.mxu0 0.0
        %784 = vmatprep.mubr.f32.mxu0 0.0
        %785 = vmatmul.mubr.f32.gmra.mrb[0].mxu0 %v716
        %v786 = vpop.f32.mrb[0].mxu0
        %v787 = vadd.f32 0.0, %v786
        %v788 = vpop.f32.mrb[0].mxu0
        %789 = vdwg.mxu0
        %s790 = scalar_lea.vmem [#allocation3], 8
        %v791 = vld [vmem:[%s790] sm:$0xff]
        %v792 = vsel %vm525, %v787, -inf
        %793 = vmax.xlane.f32.xlu0 %v792
        %v794 = vpop.xlane.xlu0 %793
        %v795 = vmax.f32 %v791, %v794
        %v796 = vsub.f32 %v791, %v795
        %v797 = vmul.f32 %v796, 1.442695
        %v798 = vpow.pop %v797
        %800 = vset.pattern.permute.xlu0 0
        %801 = vperm.xlu0 %800, %v795
        %v802 = vpop.permute.xlu0 %801
        %v804 = vsub.f32 %v787, %v802
        %v805 = vmul.f32 %v804, 1.442695
        %v806 = vpow.pop %v805
        %s807 = scalar_lea.vmem [#allocation4], 8
        %v808 = vld [vmem:[%s807] sm:$0xff]
        %v809 = vmul.f32 %v798, %v808
        %v810 = vsel %vm525, %v806, 0.0
        %811 = vadd.xlane.f32.xlu0 %v810
        %v812 = vpop.xlane.xlu0 %811
        %v813 = vadd.f32 %v809, %v812
        %814 = vst.msk [vmem:[%s807] sm:$0xff] %vm624, %v813
        %s815 = scalar_lea.vmem [#allocation5], 8
        %v816 = vld [vmem:[%s815] sm:$0xff]
        %818 = vset.pattern.permute.xlu0 0
        %819 = vperm.xlu0 %818, %v798
        %v820 = vpop.permute.xlu0 %819
        %v822 = vmul.f32 %v820, %v816
        %823 = vrot.lane.b32.xlu0 %v521, 88
        %v824 = vpop.permute.xlu0 %823
        %v827 = vsel %vm525, %v806, 0
        %829 = vmatprep.subr.mxu0 0.0
        %830 = vmatpush1.msra.mxu0 %v824
        %831 = vmatprep.subr.mxu0 0.0
        %832 = vmatpush1.msra.mxu0 0.0
        %833 = vmatprep.subr.mxu0 0.0
        %834 = vmatpush1.msra.mxu0 0.0
        %835 = vmatprep.subr.mxu0 0.0
        %836 = vmatpush1.msra.mxu0 0.0
        %837 = vmatprep.subr.mxu0 0.0
        %838 = vmatpush1.msra.mxu0 0.0
        %839 = vmatprep.subr.mxu0 0.0
        %840 = vmatpush1.msra.mxu0 0.0
        %841 = vmatprep.subr.mxu0 0.0
        %842 = vmatpush1.msra.mxu0 0.0
        %843 = vmatprep.subr.mxu0 0.0
        %844 = vmatpush1.msra.mxu0 0.0
        %845 = vmatprep.subr.mxu0 0.0
        %846 = vmatpush1.msra.mxu0 0.0
        %847 = vmatprep.subr.mxu0 0.0
        %848 = vmatpush1.msra.mxu0 0.0
        %849 = vmatprep.subr.mxu0 0.0
        %850 = vmatpush1.msra.mxu0 0.0
        %851 = vmatprep.subr.mxu0 0.0
        %852 = vmatpush1.msra.mxu0 0.0
        %853 = vmatprep.subr.mxu0 0.0
        %854 = vmatpush1.msra.mxu0 0.0
        %855 = vmatprep.subr.mxu0 0.0
        %856 = vmatpush1.msra.mxu0 0.0
        %857 = vmatprep.subr.mxu0 0.0
        %858 = vmatpush1.msra.mxu0 0.0
        %859 = vmatprep.subr.mxu0 0.0
        %860 = vmatpush1.msra.mxu0 0.0
        %861 = vmatprep.subr.mxu0 0.0
        %862 = vmatpush1.msra.mxu0 0.0
        %863 = vmatprep.subr.mxu0 0.0
        %864 = vmatpush1.msra.mxu0 0.0
        %865 = vmatprep.subr.mxu0 0.0
        %866 = vmatpush1.msra.mxu0 0.0
        %867 = vmatprep.subr.mxu0 0.0
        %868 = vmatpush1.msra.mxu0 0.0
        %869 = vmatprep.subr.mxu0 0.0
        %870 = vmatpush1.msra.mxu0 0.0
        %871 = vmatprep.subr.mxu0 0.0
        %872 = vmatpush1.msra.mxu0 0.0
        %873 = vmatprep.subr.mxu0 0.0
        %874 = vmatpush1.msra.mxu0 0.0
        %875 = vmatprep.subr.mxu0 0.0
        %876 = vmatpush1.msra.mxu0 0.0
        %877 = vmatprep.subr.mxu0 0.0
        %878 = vmatpush1.msra.mxu0 0.0
        %879 = vmatprep.subr.mxu0 0.0
        %880 = vmatpush1.msra.mxu0 0.0
        %881 = vmatprep.subr.mxu0 0.0
        %882 = vmatpush1.msra.mxu0 0.0
        %883 = vmatprep.subr.mxu0 0.0
        %884 = vmatpush1.msra.mxu0 0.0
        %885 = vmatprep.subr.mxu0 0.0
        %886 = vmatpush1.msra.mxu0 0.0
        %887 = vmatprep.subr.mxu0 0.0
        %888 = vmatpush1.msra.mxu0 0.0
        %889 = vmatprep.subr.mxu0 0.0
        %890 = vmatpush1.msra.mxu0 0.0
        %891 = vmatprep.subr.mxu0 0.0
        %892 = vmatpush1.msra.mxu0 0.0
        %893 = vmatprep.mubr.f32.mxu0 0.0
        %894 = vmatmul.mubr.f32.gmra.mrb[0].mxu0 %v827
        %v895 = vpop.f32.mrb[0].mxu0
        %v896 = vadd.f32 0.0, %v895
        %v897 = vpop.f32.mrb[0].mxu0
        %898 = vdwg.mxu0
        %v899 = vadd.f32 %v822, %v896
        %900 = vst.msk [vmem:[%s815] sm:$0xff] %vm525, %v899
        %901 = vst.msk [vmem:[%s790] sm:$0xff] %vm624, %v795
        %902 = vrot.lane.b32.xlu0 %v524, 112
        %v903 = vpop.permute.xlu0 %902
        %904 = vrot.lane.b32.xlu0 %v521, 112
        %v905 = vpop.permute.xlu0 %904
        %v906 = vsel %vm525, %v903, 0
        %v908 = vsel %vm525, %v905, 0
        %910 = vmatprep.subr.mxu0 0.0
        %911 = vmatpush1.xpose.msra.mxu0 %v908
        %912 = vmatprep.subr.mxu0 0.0
        %913 = vmatpush1.xpose.msra.mxu0 0.0
        %914 = vmatprep.subr.mxu0 0.0
        %915 = vmatpush1.xpose.msra.mxu0 0.0
        %916 = vmatprep.subr.mxu0 0.0
        %917 = vmatpush1.xpose.msra.mxu0 0.0
        %918 = vmatprep.subr.mxu0 0.0
        %919 = vmatpush1.xpose.msra.mxu0 0.0
        %920 = vmatprep.subr.mxu0 0.0
        %921 = vmatpush1.xpose.msra.mxu0 0.0
        %922 = vmatprep.subr.mxu0 0.0
        %923 = vmatpush1.xpose.msra.mxu0 0.0
        %924 = vmatprep.subr.mxu0 0.0
        %925 = vmatpush1.xpose.msra.mxu0 0.0
        %926 = vmatprep.subr.mxu0 0.0
        %927 = vmatpush1.xpose.msra.mxu0 0.0
        %928 = vmatprep.subr.mxu0 0.0
        %929 = vmatpush1.xpose.msra.mxu0 0.0
        %930 = vmatprep.subr.mxu0 0.0
        %931 = vmatpush1.xpose.msra.mxu0 0.0
        %932 = vmatprep.subr.mxu0 0.0
        %933 = vmatpush1.xpose.msra.mxu0 0.0
        %934 = vmatprep.subr.mxu0 0.0
        %935 = vmatpush1.xpose.msra.mxu0 0.0
        %936 = vmatprep.subr.mxu0 0.0
        %937 = vmatpush1.xpose.msra.mxu0 0.0
        %938 = vmatprep.subr.mxu0 0.0
        %939 = vmatpush1.xpose.msra.mxu0 0.0
        %940 = vmatprep.subr.mxu0 0.0
        %941 = vmatpush1.xpose.msra.mxu0 0.0
        %942 = vmatprep.subr.mxu0 0.0
        %943 = vmatpush1.xpose.msra.mxu0 0.0
        %944 = vmatprep.subr.mxu0 0.0
        %945 = vmatpush1.xpose.msra.mxu0 0.0
        %946 = vmatprep.subr.mxu0 0.0
        %947 = vmatpush1.xpose.msra.mxu0 0.0
        %948 = vmatprep.subr.mxu0 0.0
        %949 = vmatpush1.xpose.msra.mxu0 0.0
        %950 = vmatprep.subr.mxu0 0.0
        %951 = vmatpush1.xpose.msra.mxu0 0.0
        %952 = vmatprep.subr.mxu0 0.0
        %953 = vmatpush1.xpose.msra.mxu0 0.0
        %954 = vmatprep.subr.mxu0 0.0
        %955 = vmatpush1.xpose.msra.mxu0 0.0
        %956 = vmatprep.subr.mxu0 0.0
        %957 = vmatpush1.xpose.msra.mxu0 0.0
        %958 = vmatprep.subr.mxu0 0.0
        %959 = vmatpush1.xpose.msra.mxu0 0.0
        %960 = vmatprep.subr.mxu0 0.0
        %961 = vmatpush1.xpose.msra.mxu0 0.0
        %962 = vmatprep.subr.mxu0 0.0
        %963 = vmatpush1.xpose.msra.mxu0 0.0
        %964 = vmatprep.subr.mxu0 0.0
        %965 = vmatpush1.xpose.msra.mxu0 0.0
        %966 = vmatprep.subr.mxu0 0.0
        %967 = vmatpush1.xpose.msra.mxu0 0.0
        %968 = vmatprep.subr.mxu0 0.0
        %969 = vmatpush1.xpose.msra.mxu0 0.0
        %970 = vmatprep.subr.mxu0 0.0
        %971 = vmatpush1.xpose.msra.mxu0 0.0
        %972 = vmatprep.subr.mxu0 0.0
        %973 = vmatpush1.xpose.msra.mxu0 0.0
        %974 = vmatprep.mubr.f32.mxu0 0.0
        %975 = vmatmul.mubr.f32.gmra.mrb[0].mxu0 %v906
        %v976 = vpop.f32.mrb[0].mxu0
        %v977 = vadd.f32 0.0, %v976
        %v978 = vpop.f32.mrb[0].mxu0
        %979 = vdwg.mxu0
        %s980 = scalar_lea.vmem [#allocation3], 16
        %v981 = vld [vmem:[%s980] sm:$0xff]
        %v982 = vsel %vm525, %v977, -inf
        %983 = vmax.xlane.f32.xlu0 %v982
        %v984 = vpop.xlane.xlu0 %983
        %v985 = vmax.f32 %v981, %v984
        %v986 = vsub.f32 %v981, %v985
        %v987 = vmul.f32 %v986, 1.442695
        %v988 = vpow.pop %v987
        %990 = vset.pattern.permute.xlu0 0
        %991 = vperm.xlu0 %990, %v985
        %v992 = vpop.permute.xlu0 %991
        %v994 = vsub.f32 %v977, %v992
        %v995 = vmul.f32 %v994, 1.442695
        %v996 = vpow.pop %v995
        %s997 = scalar_lea.vmem [#allocation4], 16
        %v998 = vld [vmem:[%s997] sm:$0xff]
        %v999 = vmul.f32 %v988, %v998
        %v1000 = vsel %vm525, %v996, 0.0
        %1001 = vadd.xlane.f32.xlu0 %v1000
        %v1002 = vpop.xlane.xlu0 %1001
        %v1003 = vadd.f32 %v999, %v1002
        %1004 = vst.msk [vmem:[%s997] sm:$0xff] %vm624, %v1003
        %s1005 = scalar_lea.vmem [#allocation5], 16
        %v1006 = vld [vmem:[%s1005] sm:$0xff]
        %1008 = vset.pattern.permute.xlu0 0
        %1009 = vperm.xlu0 %1008, %v988
        %v1010 = vpop.permute.xlu0 %1009
        %v1012 = vmul.f32 %v1010, %v1006
        %1013 = vrot.lane.b32.xlu0 %v521, 80
        %v1014 = vpop.permute.xlu0 %1013
        %v1017 = vsel %vm525, %v996, 0
        %1019 = vmatprep.subr.mxu0 0.0
        %1020 = vmatpush1.msra.mxu0 %v1014
        %1021 = vmatprep.subr.mxu0 0.0
        %1022 = vmatpush1.msra.mxu0 0.0
        %1023 = vmatprep.subr.mxu0 0.0
        %1024 = vmatpush1.msra.mxu0 0.0
        %1025 = vmatprep.subr.mxu0 0.0
        %1026 = vmatpush1.msra.mxu0 0.0
        %1027 = vmatprep.subr.mxu0 0.0
        %1028 = vmatpush1.msra.mxu0 0.0
        %1029 = vmatprep.subr.mxu0 0.0
        %1030 = vmatpush1.msra.mxu0 0.0
        %1031 = vmatprep.subr.mxu0 0.0
        %1032 = vmatpush1.msra.mxu0 0.0
        %1033 = vmatprep.subr.mxu0 0.0
        %1034 = vmatpush1.msra.mxu0 0.0
        %1035 = vmatprep.subr.mxu0 0.0
        %1036 = vmatpush1.msra.mxu0 0.0
        %1037 = vmatprep.subr.mxu0 0.0
        %1038 = vmatpush1.msra.mxu0 0.0
        %1039 = vmatprep.subr.mxu0 0.0
        %1040 = vmatpush1.msra.mxu0 0.0
        %1041 = vmatprep.subr.mxu0 0.0
        %1042 = vmatpush1.msra.mxu0 0.0
        %1043 = vmatprep.subr.mxu0 0.0
        %1044 = vmatpush1.msra.mxu0 0.0
        %1045 = vmatprep.subr.mxu0 0.0
        %1046 = vmatpush1.msra.mxu0 0.0
        %1047 = vmatprep.subr.mxu0 0.0
        %1048 = vmatpush1.msra.mxu0 0.0
        %1049 = vmatprep.subr.mxu0 0.0
        %1050 = vmatpush1.msra.mxu0 0.0
        %1051 = vmatprep.subr.mxu0 0.0
        %1052 = vmatpush1.msra.mxu0 0.0
        %1053 = vmatprep.subr.mxu0 0.0
        %1054 = vmatpush1.msra.mxu0 0.0
        %1055 = vmatprep.subr.mxu0 0.0
        %1056 = vmatpush1.msra.mxu0 0.0
        %1057 = vmatprep.subr.mxu0 0.0
        %1058 = vmatpush1.msra.mxu0 0.0
        %1059 = vmatprep.subr.mxu0 0.0
        %1060 = vmatpush1.msra.mxu0 0.0
        %1061 = vmatprep.subr.mxu0 0.0
        %1062 = vmatpush1.msra.mxu0 0.0
        %1063 = vmatprep.subr.mxu0 0.0
        %1064 = vmatpush1.msra.mxu0 0.0
        %1065 = vmatprep.subr.mxu0 0.0
        %1066 = vmatpush1.msra.mxu0 0.0
        %1067 = vmatprep.subr.mxu0 0.0
        %1068 = vmatpush1.msra.mxu0 0.0
        %1069 = vmatprep.subr.mxu0 0.0
        %1070 = vmatpush1.msra.mxu0 0.0
        %1071 = vmatprep.subr.mxu0 0.0
        %1072 = vmatpush1.msra.mxu0 0.0
        %1073 = vmatprep.subr.mxu0 0.0
        %1074 = vmatpush1.msra.mxu0 0.0
        %1075 = vmatprep.subr.mxu0 0.0
        %1076 = vmatpush1.msra.mxu0 0.0
        %1077 = vmatprep.subr.mxu0 0.0
        %1078 = vmatpush1.msra.mxu0 0.0
        %1079 = vmatprep.subr.mxu0 0.0
        %1080 = vmatpush1.msra.mxu0 0.0
        %1081 = vmatprep.subr.mxu0 0.0
        %1082 = vmatpush1.msra.mxu0 0.0
        %1083 = vmatprep.mubr.f32.mxu0 0.0
        %1084 = vmatmul.mubr.f32.gmra.mrb[0].mxu0 %v1017
        %v1085 = vpop.f32.mrb[0].mxu0
        %v1086 = vadd.f32 0.0, %v1085
        %v1087 = vpop.f32.mrb[0].mxu0
        %1088 = vdwg.mxu0
        %v1089 = vadd.f32 %v1012, %v1086
        %1090 = vst.msk [vmem:[%s1005] sm:$0xff] %vm525, %v1089
        %1091 = vst.msk [vmem:[%s980] sm:$0xff] %vm624, %v985
        %1092 = vrot.lane.b32.xlu0 %v524, 104
        %v1093 = vpop.permute.xlu0 %1092
        %1094 = vrot.lane.b32.xlu0 %v521, 104
        %v1095 = vpop.permute.xlu0 %1094
        %v1096 = vsel %vm525, %v1093, 0
        %v1098 = vsel %vm525, %v1095, 0
        %1100 = vmatprep.subr.mxu0 0.0
        %1101 = vmatpush1.xpose.msra.mxu0 %v1098
        %1102 = vmatprep.subr.mxu0 0.0
        %1103 = vmatpush1.xpose.msra.mxu0 0.0
        %1104 = vmatprep.subr.mxu0 0.0
        %1105 = vmatpush1.xpose.msra.mxu0 0.0
        %1106 = vmatprep.subr.mxu0 0.0
        %1107 = vmatpush1.xpose.msra.mxu0 0.0
        %1108 = vmatprep.subr.mxu0 0.0
        %1109 = vmatpush1.xpose.msra.mxu0 0.0
        %1110 = vmatprep.subr.mxu0 0.0
        %1111 = vmatpush1.xpose.msra.mxu0 0.0
        %1112 = vmatprep.subr.mxu0 0.0
        %1113 = vmatpush1.xpose.msra.mxu0 0.0
        %1114 = vmatprep.subr.mxu0 0.0
        %1115 = vmatpush1.xpose.msra.mxu0 0.0
        %1116 = vmatprep.subr.mxu0 0.0
        %1117 = vmatpush1.xpose.msra.mxu0 0.0
        %1118 = vmatprep.subr.mxu0 0.0
        %1119 = vmatpush1.xpose.msra.mxu0 0.0
        %1120 = vmatprep.subr.mxu0 0.0
        %1121 = vmatpush1.xpose.msra.mxu0 0.0
        %1122 = vmatprep.subr.mxu0 0.0
        %1123 = vmatpush1.xpose.msra.mxu0 0.0
        %1124 = vmatprep.subr.mxu0 0.0
        %1125 = vmatpush1.xpose.msra.mxu0 0.0
        %1126 = vmatprep.subr.mxu0 0.0
        %1127 = vmatpush1.xpose.msra.mxu0 0.0
        %1128 = vmatprep.subr.mxu0 0.0
        %1129 = vmatpush1.xpose.msra.mxu0 0.0
        %1130 = vmatprep.subr.mxu0 0.0
        %1131 = vmatpush1.xpose.msra.mxu0 0.0
        %1132 = vmatprep.subr.mxu0 0.0
        %1133 = vmatpush1.xpose.msra.mxu0 0.0
        %1134 = vmatprep.subr.mxu0 0.0
        %1135 = vmatpush1.xpose.msra.mxu0 0.0
        %1136 = vmatprep.subr.mxu0 0.0
        %1137 = vmatpush1.xpose.msra.mxu0 0.0
        %1138 = vmatprep.subr.mxu0 0.0
        %1139 = vmatpush1.xpose.msra.mxu0 0.0
        %1140 = vmatprep.subr.mxu0 0.0
        %1141 = vmatpush1.xpose.msra.mxu0 0.0
        %1142 = vmatprep.subr.mxu0 0.0
        %1143 = vmatpush1.xpose.msra.mxu0 0.0
        %1144 = vmatprep.subr.mxu0 0.0
        %1145 = vmatpush1.xpose.msra.mxu0 0.0
        %1146 = vmatprep.subr.mxu0 0.0
        %1147 = vmatpush1.xpose.msra.mxu0 0.0
        %1148 = vmatprep.subr.mxu0 0.0
        %1149 = vmatpush1.xpose.msra.mxu0 0.0
        %1150 = vmatprep.subr.mxu0 0.0
        %1151 = vmatpush1.xpose.msra.mxu0 0.0
        %1152 = vmatprep.subr.mxu0 0.0
        %1153 = vmatpush1.xpose.msra.mxu0 0.0
        %1154 = vmatprep.subr.mxu0 0.0
        %1155 = vmatpush1.xpose.msra.mxu0 0.0
        %1156 = vmatprep.subr.mxu0 0.0
        %1157 = vmatpush1.xpose.msra.mxu0 0.0
        %1158 = vmatprep.subr.mxu0 0.0
        %1159 = vmatpush1.xpose.msra.mxu0 0.0
        %1160 = vmatprep.subr.mxu0 0.0
        %1161 = vmatpush1.xpose.msra.mxu0 0.0
        %1162 = vmatprep.subr.mxu0 0.0
        %1163 = vmatpush1.xpose.msra.mxu0 0.0
        %1164 = vmatprep.mubr.f32.mxu0 0.0
        %1165 = vmatmul.mubr.f32.gmra.mrb[0].mxu0 %v1096
        %v1166 = vpop.f32.mrb[0].mxu0
        %v1167 = vadd.f32 0.0, %v1166
        %v1168 = vpop.f32.mrb[0].mxu0
        %1169 = vdwg.mxu0
        %s1170 = scalar_lea.vmem [#allocation3], 24
        %v1171 = vld [vmem:[%s1170] sm:$0xff]
        %v1172 = vsel %vm525, %v1167, -inf
        %1173 = vmax.xlane.f32.xlu0 %v1172
        %v1174 = vpop.xlane.xlu0 %1173
        %v1175 = vmax.f32 %v1171, %v1174
        %v1176 = vsub.f32 %v1171, %v1175
        %v1177 = vmul.f32 %v1176, 1.442695
        %v1178 = vpow.pop %v1177
        %1180 = vset.pattern.permute.xlu0 0
        %1181 = vperm.xlu0 %1180, %v1175
        %v1182 = vpop.permute.xlu0 %1181
        %v1184 = vsub.f32 %v1167, %v1182
        %v1185 = vmul.f32 %v1184, 1.442695
        %v1186 = vpow.pop %v1185
        %s1187 = scalar_lea.vmem [#allocation4], 24
        %v1188 = vld [vmem:[%s1187] sm:$0xff]
        %v1189 = vmul.f32 %v1178, %v1188
        %v1190 = vsel %vm525, %v1186, 0.0
        %1191 = vadd.xlane.f32.xlu0 %v1190
        %v1192 = vpop.xlane.xlu0 %1191
        %v1193 = vadd.f32 %v1189, %v1192
        %1194 = vst.msk [vmem:[%s1187] sm:$0xff] %vm624, %v1193
        %s1195 = scalar_lea.vmem [#allocation5], 24
        %v1196 = vld [vmem:[%s1195] sm:$0xff]
        %1198 = vset.pattern.permute.xlu0 0
        %1199 = vperm.xlu0 %1198, %v1178
        %v1200 = vpop.permute.xlu0 %1199
        %v1202 = vmul.f32 %v1200, %v1196
        %1203 = vrot.lane.b32.xlu0 %v521, 72
        %v1204 = vpop.permute.xlu0 %1203
        %v1207 = vsel %vm525, %v1186, 0
        %1209 = vmatprep.subr.mxu0 0.0
        %1210 = vmatpush1.msra.mxu0 %v1204
        %1211 = vmatprep.subr.mxu0 0.0
        %1212 = vmatpush1.msra.mxu0 0.0
        %1213 = vmatprep.subr.mxu0 0.0
        %1214 = vmatpush1.msra.mxu0 0.0
        %1215 = vmatprep.subr.mxu0 0.0
        %1216 = vmatpush1.msra.mxu0 0.0
        %1217 = vmatprep.subr.mxu0 0.0
        %1218 = vmatpush1.msra.mxu0 0.0
        %1219 = vmatprep.subr.mxu0 0.0
        %1220 = vmatpush1.msra.mxu0 0.0
        %1221 = vmatprep.subr.mxu0 0.0
        %1222 = vmatpush1.msra.mxu0 0.0
        %1223 = vmatprep.subr.mxu0 0.0
        %1224 = vmatpush1.msra.mxu0 0.0
        %1225 = vmatprep.subr.mxu0 0.0
        %1226 = vmatpush1.msra.mxu0 0.0
        %1227 = vmatprep.subr.mxu0 0.0
        %1228 = vmatpush1.msra.mxu0 0.0
        %1229 = vmatprep.subr.mxu0 0.0
        %1230 = vmatpush1.msra.mxu0 0.0
        %1231 = vmatprep.subr.mxu0 0.0
        %1232 = vmatpush1.msra.mxu0 0.0
        %1233 = vmatprep.subr.mxu0 0.0
        %1234 = vmatpush1.msra.mxu0 0.0
        %1235 = vmatprep.subr.mxu0 0.0
        %1236 = vmatpush1.msra.mxu0 0.0
        %1237 = vmatprep.subr.mxu0 0.0
        %1238 = vmatpush1.msra.mxu0 0.0
        %1239 = vmatprep.subr.mxu0 0.0
        %1240 = vmatpush1.msra.mxu0 0.0
        %1241 = vmatprep.subr.mxu0 0.0
        %1242 = vmatpush1.msra.mxu0 0.0
        %1243 = vmatprep.subr.mxu0 0.0
        %1244 = vmatpush1.msra.mxu0 0.0
        %1245 = vmatprep.subr.mxu0 0.0
        %1246 = vmatpush1.msra.mxu0 0.0
        %1247 = vmatprep.subr.mxu0 0.0
        %1248 = vmatpush1.msra.mxu0 0.0
        %1249 = vmatprep.subr.mxu0 0.0
        %1250 = vmatpush1.msra.mxu0 0.0
        %1251 = vmatprep.subr.mxu0 0.0
        %1252 = vmatpush1.msra.mxu0 0.0
        %1253 = vmatprep.subr.mxu0 0.0
        %1254 = vmatpush1.msra.mxu0 0.0
        %1255 = vmatprep.subr.mxu0 0.0
        %1256 = vmatpush1.msra.mxu0 0.0
        %1257 = vmatprep.subr.mxu0 0.0
        %1258 = vmatpush1.msra.mxu0 0.0
        %1259 = vmatprep.subr.mxu0 0.0
        %1260 = vmatpush1.msra.mxu0 0.0
        %1261 = vmatprep.subr.mxu0 0.0
        %1262 = vmatpush1.msra.mxu0 0.0
        %1263 = vmatprep.subr.mxu0 0.0
        %1264 = vmatpush1.msra.mxu0 0.0
        %1265 = vmatprep.subr.mxu0 0.0
        %1266 = vmatpush1.msra.mxu0 0.0
        %1267 = vmatprep.subr.mxu0 0.0
        %1268 = vmatpush1.msra.mxu0 0.0
        %1269 = vmatprep.subr.mxu0 0.0
        %1270 = vmatpush1.msra.mxu0 0.0
        %1271 = vmatprep.subr.mxu0 0.0
        %1272 = vmatpush1.msra.mxu0 0.0
        %1273 = vmatprep.mubr.f32.mxu0 0.0
        %1274 = vmatmul.mubr.f32.gmra.mrb[0].mxu0 %v1207
        %v1275 = vpop.f32.mrb[0].mxu0
        %v1276 = vadd.f32 0.0, %v1275
        %v1277 = vpop.f32.mrb[0].mxu0
        %1278 = vdwg.mxu0
        %v1279 = vadd.f32 %v1202, %v1276
        %1280 = vst.msk [vmem:[%s1195] sm:$0xff] %vm525, %v1279
        %1281 = vst.msk [vmem:[%s1170] sm:$0xff] %vm624, %v1175
        // Predicated region
        $region65: #{tpu_custom_call.1} parent=39 // pred_check
          %p1282 = pneg %p347
        $region66: #{tpu_custom_call.1} parent=39 // pred_check_branch
          %1284 = sbr.rel (%p1282) target = $region68
        $region67: #{tpu_custom_call.1} parent=39 // pred_region
          %v1285 = vld [vmem:[#allocation5] sm:$0xff]
          %v1286 = vld [vmem:[#allocation4] sm:$0xff]
          %v1287 = vrcp.pop %v1286
          %1289 = vset.pattern.permute.xlu0 0
          %1290 = vperm.xlu0 %1289, %v1287
          %v1291 = vpop.permute.xlu0 %1290
          %v1293 = vmul.f32 %v1285, %v1291
          %v1294 = vld [vmem:[#allocation14] sm:$0xff]
          %v1295 = vld [vmem:[%s815] sm:$0xff]
          %v1296 = vld [vmem:[%s807] sm:$0xff]
          %v1297 = vrcp.pop %v1296
          %1299 = vset.pattern.permute.xlu0 0
          %1300 = vperm.xlu0 %1299, %v1297
          %v1301 = vpop.permute.xlu0 %1300
          %v1303 = vmul.f32 %v1295, %v1301
          %v1304 = vld [vmem:[#allocation14 + $0x8] sm:$0xff]
          %v1306 = vsel %vm525, %v1303, 0
          %1308 = vmatprep.subr.mxu0 0.0
          %1309 = vmatpush1.msra.mxu0 %v1304
          %1310 = vmatprep.subr.mxu0 0.0
          %1311 = vmatpush1.msra.mxu0 0.0
          %1312 = vmatprep.subr.mxu0 0.0
          %1313 = vmatpush1.msra.mxu0 0.0
          %1314 = vmatprep.subr.mxu0 0.0
          %1315 = vmatpush1.msra.mxu0 0.0
          %1316 = vmatprep.subr.mxu0 0.0
          %1317 = vmatpush1.msra.mxu0 0.0
          %1318 = vmatprep.subr.mxu0 0.0
          %1319 = vmatpush1.msra.mxu0 0.0
          %1320 = vmatprep.subr.mxu0 0.0
          %1321 = vmatpush1.msra.mxu0 0.0
          %1322 = vmatprep.subr.mxu0 0.0
          %1323 = vmatpush1.msra.mxu0 0.0
          %1324 = vmatprep.subr.mxu0 0.0
          %1325 = vmatpush1.msra.mxu0 0.0
          %1326 = vmatprep.subr.mxu0 0.0
          %1327 = vmatpush1.msra.mxu0 0.0
          %1328 = vmatprep.subr.mxu0 0.0
          %1329 = vmatpush1.msra.mxu0 0.0
          %1330 = vmatprep.subr.mxu0 0.0
          %1331 = vmatpush1.msra.mxu0 0.0
          %1332 = vmatprep.subr.mxu0 0.0
          %1333 = vmatpush1.msra.mxu0 0.0
          %1334 = vmatprep.subr.mxu0 0.0
          %1335 = vmatpush1.msra.mxu0 0.0
          %1336 = vmatprep.subr.mxu0 0.0
          %1337 = vmatpush1.msra.mxu0 0.0
          %1338 = vmatprep.subr.mxu0 0.0
          %1339 = vmatpush1.msra.mxu0 0.0
          %1340 = vmatprep.subr.mxu0 0.0
          %1341 = vmatpush1.msra.mxu0 0.0
          %1342 = vmatprep.subr.mxu0 0.0
          %1343 = vmatpush1.msra.mxu0 0.0
          %1344 = vmatprep.subr.mxu0 0.0
          %1345 = vmatpush1.msra.mxu0 0.0
          %1346 = vmatprep.subr.mxu0 0.0
          %1347 = vmatpush1.msra.mxu0 0.0
          %1348 = vmatprep.subr.mxu0 0.0
          %1349 = vmatpush1.msra.mxu0 0.0
          %1350 = vmatprep.subr.mxu0 0.0
          %1351 = vmatpush1.msra.mxu0 0.0
          %1352 = vmatprep.subr.mxu0 0.0
          %1353 = vmatpush1.msra.mxu0 0.0
          %1354 = vmatprep.subr.mxu0 0.0
          %1355 = vmatpush1.msra.mxu0 0.0
          %1356 = vmatprep.subr.mxu0 0.0
          %1357 = vmatpush1.msra.mxu0 0.0
          %1358 = vmatprep.subr.mxu0 0.0
          %1359 = vmatpush1.msra.mxu0 0.0
          %1360 = vmatprep.subr.mxu0 0.0
          %1361 = vmatpush1.msra.mxu0 0.0
          %1362 = vmatprep.subr.mxu0 0.0
          %1363 = vmatpush1.msra.mxu0 0.0
          %1364 = vmatprep.subr.mxu0 0.0
          %1365 = vmatpush1.msra.mxu0 0.0
          %1366 = vmatprep.subr.mxu0 0.0
          %1367 = vmatpush1.msra.mxu0 0.0
          %1368 = vmatprep.subr.mxu0 0.0
          %1369 = vmatpush1.msra.mxu0 0.0
          %1370 = vmatprep.subr.mxu0 0.0
          %1371 = vmatpush1.msra.mxu0 0.0
          %1372 = vmatprep.mubr.f32.mxu0 0.0
          %1373 = vmatmul.mubr.f32.gmra.mrb[0].mxu0 %v1306
          %v1374 = vpop.f32.mrb[0].mxu0
          %v1375 = vadd.f32 0.0, %v1374
          %v1376 = vpop.f32.mrb[0].mxu0
          %1377 = vdwg.mxu0
          %v1379 = vsel %vm525, %v1293, 0
          %1381 = vmatprep.subr.mxu0 0.0
          %1382 = vmatpush1.msra.mxu0 %v1294
          %1383 = vmatprep.subr.mxu0 0.0
          %1384 = vmatpush1.msra.mxu0 0.0
          %1385 = vmatprep.subr.mxu0 0.0
          %1386 = vmatpush1.msra.mxu0 0.0
          %1387 = vmatprep.subr.mxu0 0.0
          %1388 = vmatpush1.msra.mxu0 0.0
          %1389 = vmatprep.subr.mxu0 0.0
          %1390 = vmatpush1.msra.mxu0 0.0
          %1391 = vmatprep.subr.mxu0 0.0
          %1392 = vmatpush1.msra.mxu0 0.0
          %1393 = vmatprep.subr.mxu0 0.0
          %1394 = vmatpush1.msra.mxu0 0.0
          %1395 = vmatprep.subr.mxu0 0.0
          %1396 = vmatpush1.msra.mxu0 0.0
          %1397 = vmatprep.subr.mxu0 0.0
          %1398 = vmatpush1.msra.mxu0 0.0
          %1399 = vmatprep.subr.mxu0 0.0
          %1400 = vmatpush1.msra.mxu0 0.0
          %1401 = vmatprep.subr.mxu0 0.0
          %1402 = vmatpush1.msra.mxu0 0.0
          %1403 = vmatprep.subr.mxu0 0.0
          %1404 = vmatpush1.msra.mxu0 0.0
          %1405 = vmatprep.subr.mxu0 0.0
          %1406 = vmatpush1.msra.mxu0 0.0
          %1407 = vmatprep.subr.mxu0 0.0
          %1408 = vmatpush1.msra.mxu0 0.0
          %1409 = vmatprep.subr.mxu0 0.0
          %1410 = vmatpush1.msra.mxu0 0.0
          %1411 = vmatprep.subr.mxu0 0.0
          %1412 = vmatpush1.msra.mxu0 0.0
          %1413 = vmatprep.subr.mxu0 0.0
          %1414 = vmatpush1.msra.mxu0 0.0
          %1415 = vmatprep.subr.mxu0 0.0
          %1416 = vmatpush1.msra.mxu0 0.0
          %1417 = vmatprep.subr.mxu0 0.0
          %1418 = vmatpush1.msra.mxu0 0.0
          %1419 = vmatprep.subr.mxu0 0.0
          %1420 = vmatpush1.msra.mxu0 0.0
          %1421 = vmatprep.subr.mxu0 0.0
          %1422 = vmatpush1.msra.mxu0 0.0
          %1423 = vmatprep.subr.mxu0 0.0
          %1424 = vmatpush1.msra.mxu0 0.0
          %1425 = vmatprep.subr.mxu0 0.0
          %1426 = vmatpush1.msra.mxu0 0.0
          %1427 = vmatprep.subr.mxu0 0.0
          %1428 = vmatpush1.msra.mxu0 0.0
          %1429 = vmatprep.subr.mxu0 0.0
          %1430 = vmatpush1.msra.mxu0 0.0
          %1431 = vmatprep.subr.mxu0 0.0
          %1432 = vmatpush1.msra.mxu0 0.0
          %1433 = vmatprep.subr.mxu0 0.0
          %1434 = vmatpush1.msra.mxu0 0.0
          %1435 = vmatprep.subr.mxu0 0.0
          %1436 = vmatpush1.msra.mxu0 0.0
          %1437 = vmatprep.subr.mxu0 0.0
          %1438 = vmatpush1.msra.mxu0 0.0
          %1439 = vmatprep.subr.mxu0 0.0
          %1440 = vmatpush1.msra.mxu0 0.0
          %1441 = vmatprep.subr.mxu0 0.0
          %1442 = vmatpush1.msra.mxu0 0.0
          %1443 = vmatprep.subr.mxu0 0.0
          %1444 = vmatpush1.msra.mxu0 0.0
          %1445 = vmatprep.mubr.f32.mxu0 0.0
          %1446 = vmatmul.mubr.f32.gmra.mrb[0].mxu0 %v1379
          %v1447 = vpop.f32.mrb[0].mxu0
          %v1448 = vadd.f32 %v1375, %v1447
          %v1449 = vpop.f32.mrb[0].mxu0
          %1450 = vdwg.mxu0
          %v1451 = vld [vmem:[%s1005] sm:$0xff]
          %v1452 = vld [vmem:[%s997] sm:$0xff]
          %v1453 = vrcp.pop %v1452
          %1455 = vset.pattern.permute.xlu0 0
          %1456 = vperm.xlu0 %1455, %v1453
          %v1457 = vpop.permute.xlu0 %1456
          %v1459 = vmul.f32 %v1451, %v1457
          %v1460 = vld [vmem:[#allocation14 + $0x10] sm:$0xff]
          %v1462 = vsel %vm525, %v1459, 0
          %1464 = vmatprep.subr.mxu0 0.0
          %1465 = vmatpush1.msra.mxu0 %v1460
          %1466 = vmatprep.subr.mxu0 0.0
          %1467 = vmatpush1.msra.mxu0 0.0
          %1468 = vmatprep.subr.mxu0 0.0
          %1469 = vmatpush1.msra.mxu0 0.0
          %1470 = vmatprep.subr.mxu0 0.0
          %1471 = vmatpush1.msra.mxu0 0.0
          %1472 = vmatprep.subr.mxu0 0.0
          %1473 = vmatpush1.msra.mxu0 0.0
          %1474 = vmatprep.subr.mxu0 0.0
          %1475 = vmatpush1.msra.mxu0 0.0
          %1476 = vmatprep.subr.mxu0 0.0
          %1477 = vmatpush1.msra.mxu0 0.0
          %1478 = vmatprep.subr.mxu0 0.0
          %1479 = vmatpush1.msra.mxu0 0.0
          %1480 = vmatprep.subr.mxu0 0.0
          %1481 = vmatpush1.msra.mxu0 0.0
          %1482 = vmatprep.subr.mxu0 0.0
          %1483 = vmatpush1.msra.mxu0 0.0
          %1484 = vmatprep.subr.mxu0 0.0
          %1485 = vmatpush1.msra.mxu0 0.0
          %1486 = vmatprep.subr.mxu0 0.0
          %1487 = vmatpush1.msra.mxu0 0.0
          %1488 = vmatprep.subr.mxu0 0.0
          %1489 = vmatpush1.msra.mxu0 0.0
          %1490 = vmatprep.subr.mxu0 0.0
          %1491 = vmatpush1.msra.mxu0 0.0
          %1492 = vmatprep.subr.mxu0 0.0
          %1493 = vmatpush1.msra.mxu0 0.0
          %1494 = vmatprep.subr.mxu0 0.0
          %1495 = vmatpush1.msra.mxu0 0.0
          %1496 = vmatprep.subr.mxu0 0.0
          %1497 = vmatpush1.msra.mxu0 0.0
          %1498 = vmatprep.subr.mxu0 0.0
          %1499 = vmatpush1.msra.mxu0 0.0
          %1500 = vmatprep.subr.mxu0 0.0
          %1501 = vmatpush1.msra.mxu0 0.0
          %1502 = vmatprep.subr.mxu0 0.0
          %1503 = vmatpush1.msra.mxu0 0.0
          %1504 = vmatprep.subr.mxu0 0.0
          %1505 = vmatpush1.msra.mxu0 0.0
          %1506 = vmatprep.subr.mxu0 0.0
          %1507 = vmatpush1.msra.mxu0 0.0
          %1508 = vmatprep.subr.mxu0 0.0
          %1509 = vmatpush1.msra.mxu0 0.0
          %1510 = vmatprep.subr.mxu0 0.0
          %1511 = vmatpush1.msra.mxu0 0.0
          %1512 = vmatprep.subr.mxu0 0.0
          %1513 = vmatpush1.msra.mxu0 0.0
          %1514 = vmatprep.subr.mxu0 0.0
          %1515 = vmatpush1.msra.mxu0 0.0
          %1516 = vmatprep.subr.mxu0 0.0
          %1517 = vmatpush1.msra.mxu0 0.0
          %1518 = vmatprep.subr.mxu0 0.0
          %1519 = vmatpush1.msra.mxu0 0.0
          %1520 = vmatprep.subr.mxu0 0.0
          %1521 = vmatpush1.msra.mxu0 0.0
          %1522 = vmatprep.subr.mxu0 0.0
          %1523 = vmatpush1.msra.mxu0 0.0
          %1524 = vmatprep.subr.mxu0 0.0
          %1525 = vmatpush1.msra.mxu0 0.0
          %1526 = vmatprep.subr.mxu0 0.0
          %1527 = vmatpush1.msra.mxu0 0.0
          %1528 = vmatprep.mubr.f32.mxu0 0.0
          %1529 = vmatmul.mubr.f32.gmra.mrb[0].mxu0 %v1462
          %v1530 = vpop.f32.mrb[0].mxu0
          %v1531 = vadd.f32 0.0, %v1530
          %v1532 = vpop.f32.mrb[0].mxu0
          %1533 = vdwg.mxu0
          %v1534 = vadd.f32 %v1448, %v1531
          %v1535 = vld [vmem:[%s1195] sm:$0xff]
          %v1536 = vld [vmem:[%s1187] sm:$0xff]
          %v1537 = vrcp.pop %v1536
          %1539 = vset.pattern.permute.xlu0 0
          %1540 = vperm.xlu0 %1539, %v1537
          %v1541 = vpop.permute.xlu0 %1540
          %v1543 = vmul.f32 %v1535, %v1541
          %v1544 = vld [vmem:[#allocation14 + $0x18] sm:$0xff]
          %v1546 = vsel %vm525, %v1543, 0
          %1548 = vmatprep.subr.mxu0 0.0
          %1549 = vmatpush1.msra.mxu0 %v1544
          %1550 = vmatprep.subr.mxu0 0.0
          %1551 = vmatpush1.msra.mxu0 0.0
          %1552 = vmatprep.subr.mxu0 0.0
          %1553 = vmatpush1.msra.mxu0 0.0
          %1554 = vmatprep.subr.mxu0 0.0
          %1555 = vmatpush1.msra.mxu0 0.0
          %1556 = vmatprep.subr.mxu0 0.0
          %1557 = vmatpush1.msra.mxu0 0.0
          %1558 = vmatprep.subr.mxu0 0.0
          %1559 = vmatpush1.msra.mxu0 0.0
          %1560 = vmatprep.subr.mxu0 0.0
          %1561 = vmatpush1.msra.mxu0 0.0
          %1562 = vmatprep.subr.mxu0 0.0
          %1563 = vmatpush1.msra.mxu0 0.0
          %1564 = vmatprep.subr.mxu0 0.0
          %1565 = vmatpush1.msra.mxu0 0.0
          %1566 = vmatprep.subr.mxu0 0.0
          %1567 = vmatpush1.msra.mxu0 0.0
          %1568 = vmatprep.subr.mxu0 0.0
          %1569 = vmatpush1.msra.mxu0 0.0
          %1570 = vmatprep.subr.mxu0 0.0
          %1571 = vmatpush1.msra.mxu0 0.0
          %1572 = vmatprep.subr.mxu0 0.0
          %1573 = vmatpush1.msra.mxu0 0.0
          %1574 = vmatprep.subr.mxu0 0.0
          %1575 = vmatpush1.msra.mxu0 0.0
          %1576 = vmatprep.subr.mxu0 0.0
          %1577 = vmatpush1.msra.mxu0 0.0
          %1578 = vmatprep.subr.mxu0 0.0
          %1579 = vmatpush1.msra.mxu0 0.0
          %1580 = vmatprep.subr.mxu0 0.0
          %1581 = vmatpush1.msra.mxu0 0.0
          %1582 = vmatprep.subr.mxu0 0.0
          %1583 = vmatpush1.msra.mxu0 0.0
          %1584 = vmatprep.subr.mxu0 0.0
          %1585 = vmatpush1.msra.mxu0 0.0
          %1586 = vmatprep.subr.mxu0 0.0
          %1587 = vmatpush1.msra.mxu0 0.0
          %1588 = vmatprep.subr.mxu0 0.0
          %1589 = vmatpush1.msra.mxu0 0.0
          %1590 = vmatprep.subr.mxu0 0.0
          %1591 = vmatpush1.msra.mxu0 0.0
          %1592 = vmatprep.subr.mxu0 0.0
          %1593 = vmatpush1.msra.mxu0 0.0
          %1594 = vmatprep.subr.mxu0 0.0
          %1595 = vmatpush1.msra.mxu0 0.0
          %1596 = vmatprep.subr.mxu0 0.0
          %1597 = vmatpush1.msra.mxu0 0.0
          %1598 = vmatprep.subr.mxu0 0.0
          %1599 = vmatpush1.msra.mxu0 0.0
          %1600 = vmatprep.subr.mxu0 0.0
          %1601 = vmatpush1.msra.mxu0 0.0
          %1602 = vmatprep.subr.mxu0 0.0
          %1603 = vmatpush1.msra.mxu0 0.0
          %1604 = vmatprep.subr.mxu0 0.0
          %1605 = vmatpush1.msra.mxu0 0.0
          %1606 = vmatprep.subr.mxu0 0.0
          %1607 = vmatpush1.msra.mxu0 0.0
          %1608 = vmatprep.subr.mxu0 0.0
          %1609 = vmatpush1.msra.mxu0 0.0
          %1610 = vmatprep.subr.mxu0 0.0
          %1611 = vmatpush1.msra.mxu0 0.0
          %1612 = vmatprep.mubr.f32.mxu0 0.0
          %1613 = vmatmul.mubr.f32.gmra.mrb[0].mxu0 %v1546
          %v1614 = vpop.f32.mrb[0].mxu0
          %v1615 = vadd.f32 0.0, %v1614
          %v1616 = vpop.f32.mrb[0].mxu0
          %1617 = vdwg.mxu0
          %v1618 = vadd.f32 %v1534, %v1615
          %1619 = vst.msk [vmem:[%s346] sm:$0xff] %vm450, %v1618
        $region68: #{tpu_custom_call.1} parent=39 // pred_fallthru
          _
        %s1620 = sand.u32 %s174, 1
        %s1621 = scalar_lea.sflag [#allocation8], %s1620
        %s1622 = sand.u32 %s174, 1
        %s1623 = smul.addr %s1622, 8
        %s1624 = scalar_lea.vmem [#allocation15], %s1623
        // Predicated region
        $region69: #{tpu_custom_call.1} parent=39 // pred_check
          %p1625 = pneg %p184
        $region70: #{tpu_custom_call.1} parent=39 // pred_check_branch
          %1627 = sbr.rel (%p1625) target = $region72
        $region71: #{tpu_custom_call.1} parent=39 // pred_region
          %s1629 = ssub.s32 128, 128
          %1630 = vsyncadd %s1621, %s1629
          %s1631 = sadd.s32 %s32, %s31
          %s1632 = smul.addr %s1631, 128
          %s1633 = scalar_lea.hbm %s5, %s1632
          %s1635 = sshll.u32 %s1624, 4
          %s1636 = int_to_ptr.vmem [resolvable:$true] %s1635
          %1638 = dma.vmem_to_hbm [thread:$0]  %s1636, 128, %s1633, %s1621
        $region72: #{tpu_custom_call.1} parent=39 // pred_fallthru
          _
      $region40: #{tpu_custom_call.1} parent=5 // pred_fallthru
        _
      %p1639 = scmp.le.s32.totalorder 2, %s21
      // Predicated region
      $region73: #{tpu_custom_call.1} parent=5 // pred_check
        %p1640 = pneg %p1639
      $region74: #{tpu_custom_call.1} parent=5 // pred_check_branch
        %1642 = sbr.rel (%p1640) target = $region76
      $region75: #{tpu_custom_call.1} parent=5 // pred_region
        %s1643 = ssub.s32 %s21, 2
        // Predicated region
        $region77: #{tpu_custom_call.1} parent=75 // pred_check
          %p1644 = pneg %p190
        $region78: #{tpu_custom_call.1} parent=75 // pred_check_branch
          %1646 = sbr.rel (%p1644) target = $region80
        $region79: #{tpu_custom_call.1} parent=75 // pred_region
          %s1647 = sand.u32 %s175, 1
          %s1648 = scalar_lea.sflag [#allocation8], %s1647
          %s1649 = sand.u32 %s175, 1
          %s1650 = smul.addr %s1649, 8
          %s1651 = scalar_lea.vmem [#allocation15], %s1650
          %1652 = dma.done %s1648, 128
        $region80: #{tpu_custom_call.1} parent=75 // pred_fallthru
          _
      $region76: #{tpu_custom_call.1} parent=5 // pred_fallthru
        _
    $region6: #{tpu_custom_call.1} parent=1 // loop_footer
      %s25 = sadd.s32 1, %s21
    $region7: #{tpu_custom_call.1} parent=1 // loop_footer_branch
      %20 = sbr.rel target = $region3
    $region8: #{tpu_custom_call.1} parent=1 // loop_exit
      _
    %1653 = vsyncpa [#allocation7], 1
    %s1654 = scalar_lea.sflag [#allocation7], 1
    %1655 = vsyncpa %s1654, 1
    %1656 = vsyncpa [#allocation10], 1
    %s1657 = scalar_lea.sflag [#allocation10], 1
    %1658 = vsyncpa %s1657, 1
    %1659 = vsyncpa [#allocation13], 1
    %1660 = vsyncpa [#allocation8], 1
    %s1661 = scalar_lea.sflag [#allocation8], 1
    %1662 = vsyncpa %s1661, 1

</llo_original>
